<compile_context>
chip_gen: v7x
topology: tpu7x:2x2x1
jax: 0.10.0
libtpu: 0.0.40
codegen_flags: <defaults>
</compile_context>

<pallas_src>
import functools

import jax
import jax.numpy as jnp
import numpy as np
from jax import lax
from jax.experimental import pallas as pl
from jax.experimental.pallas import tpu as pltpu


# ----------------------------------------------------------------------------
# Pallas kernel: fused pooling + multi-pool cross-attention (channel-major)
# ----------------------------------------------------------------------------
def _multi_attn_kernel(x_ref, y_ref, sel_ref, emask_ref,
                       wx_ref, bx_ref, wy_ref, by_ref,
                       asc_ref, bsc_ref, out_ref):
    f32 = jnp.float32
    bf16 = jnp.bfloat16

    NB = x_ref.shape[0]                 # batches handled by this grid step
    C = x_ref.shape[1]                  # channels
    nP = emask_ref.shape[0]             # 3 * pooled pixels (all pooling heads)
    P = out_ref.shape[2] // 2           # pooled pixels per pooling head
    k2 = sel_ref.shape[1] // P          # pool window size (k*k corners)
    CC = wx_ref.shape[0]                # Cq + C
    Cq = CC - C

    sel = sel_ref[...]                  # (HW, k2*P) f32 corner-selection matrix
    emask = emask_ref[...]              # (nP, nP) additive block-diagonal mask
    wx = wx_ref[...]                    # (CC, C) bf16 = [wk | wv1]^T
    wy = wy_ref[...]                    # (CC, C) bf16 = [wq | wv2]^T
    bx = bx_ref[...]                    # (CC, 1) f32
    by = by_ref[...]                    # (CC, 1) f32
    asc = asc_ref[...]                  # (1, nP) f32 = a_pool / 3 per column
    bsc = bsc_ref[...]                  # (1, nP) f32 = b_pool / 3 per column

    def pool3(img):
        """img (C, H*W) -> stacked pooled (C, 3P): [max | avg | L2]."""
        corners = jnp.dot(img, sel, preferred_element_type=f32)     # (C, k2*P)
        cs = [corners[:, t * P:(t + 1) * P] for t in range(k2)]
        mx, sm, sq = cs[0], cs[0], cs[0] * cs[0]
        for cb in cs[1:]:
            mx = jnp.maximum(mx, cb)
            sm = sm + cb
            sq = sq + cb * cb
        return jnp.concatenate([mx, sm * (1.0 / k2), jnp.sqrt(sq)], axis=-1)

    for nb in range(NB):                # static unroll over the batch block
        Xp = pool3(x_ref[nb])           # (C, nP) pooled x, channel-major
        Yp = pool3(y_ref[nb])           # (C, nP) pooled y

        # Fused 1x1 convolutions: bf16 MXU operands, f32 accumulation.
        #   KV1 = [K ; V1] from x,  QV2 = [Q ; V2] from y  (channel-major).
        KV1 = jnp.dot(wx, Xp.astype(bf16), preferred_element_type=f32) + bx  # (CC, nP)
        QV2 = jnp.dot(wy, Yp.astype(bf16), preferred_element_type=f32) + by  # (CC, nP)

        K = KV1[:Cq, :]                 # (Cq, nP)
        V1 = KV1[Cq:, :] * asc          # (C, nP)   a_i/3 folded in per pool
        Q = QV2[:Cq, :]                 # (Cq, nP)
        V2 = QV2[Cq:, :] * bsc          # (C, nP)

        # All 3 pooling heads in one block-diagonal energy / softmax.
        # energy[i, j] = <q_i, k_j>; off-block entries are masked to -1e9.
        E = jnp.dot(Q.T.astype(bf16), K.astype(bf16),
                    preferred_element_type=f32) + emask              # (nP, nP)

        # attention1 = softmax(dim=-1); attention2 = softmax(dim=1) via E^T —
        # both are lane reductions; the divide goes to the EUP via reciprocal.
        e1 = jnp.exp(E - jnp.max(E, axis=-1, keepdims=True))
        A1 = e1 * pl.reciprocal(jnp.sum(e1, axis=-1, keepdims=True), approx=False)
        Et = E.T
        e2 = jnp.exp(Et - jnp.max(Et, axis=-1, keepdims=True))
        A2t = e2 * pl.reciprocal(jnp.sum(e2, axis=-1, keepdims=True), approx=False)
        # A2t[j, i] == attention2[i, j]

        # outx[c, j] = sum_i V1[c, i] * attention2[i, j]
        OX = lax.dot_general(V1.astype(bf16), A2t.astype(bf16),
                             (((1,), (1,)), ((), ())),
                             preferred_element_type=f32)              # (C, nP)
        # outy[c, i] = sum_j V2[c, j] * attention1[i, j]
        OY = lax.dot_general(V2.astype(bf16), A1.astype(bf16),
                             (((1,), (1,)), ((), ())),
                             preferred_element_type=f32)              # (C, nP)

        # cross-pool sum: two lane-block adds per stream
        accx = OX[:, 0:P] + OX[:, P:2 * P] + OX[:, 2 * P:3 * P]       # (C, P)
        accy = OY[:, 0:P] + OY[:, P:2 * P] + OY[:, 2 * P:3 * P]       # (C, P)

        # single lane-dense store (2P = 128 lanes -> unmasked vst)
        out_ref[nb] = jnp.concatenate([accx, accy], axis=-1)          # (C, 2P)


def _batch_block(batch):
    """Single-TC chips (v5e/v6e): collapse the batch grid into one invocation.
    Dual-TC chips (v4/v5p/v7x megacore): keep grid=(B,) with parallel semantics."""
    try:
        kind = jax.devices()[0].device_kind.lower()
    except Exception:
        return 1
    single_tc = ('lite' in kind) or ('v5e' in kind) or ('v6' in kind)
    return batch if single_tc else 1


def pooled_attention(x3, y3, consts, batch_block):
    """x3, y3: (B, C, H*W) float32 -> (B, C, 2P) = [outx | outy] channel-major."""
    B, C, HW = x3.shape
    nP = consts['emask'].shape[0]
    P = nP // 3
    nb = batch_block
    grid = (B // nb,)
    full2 = lambda b: (0, 0)

    in_specs = [
        pl.BlockSpec((nb, C, HW), lambda b: (b, 0, 0)),      # x (raw, pre-pooling)
        pl.BlockSpec((nb, C, HW), lambda b: (b, 0, 0)),      # y
        pl.BlockSpec(consts['sel'].shape, full2),            # pooling corner selector
        pl.BlockSpec(consts['emask'].shape, full2),          # block-diagonal mask
        pl.BlockSpec(consts['wx_t'].shape, full2),           # [wk|wv1]^T (bf16)
        pl.BlockSpec(consts['bx'].shape, full2),             # [bk|bv1]^T
        pl.BlockSpec(consts['wy_t'].shape, full2),           # [wq|wv2]^T (bf16)
        pl.BlockSpec(consts['by'].shape, full2),             # [bq|bv2]^T
        pl.BlockSpec(consts['ascale'].shape, full2),         # a_i/3 column scale
        pl.BlockSpec(consts['bscale'].shape, full2),         # b_i/3 column scale
    ]
    out_specs = pl.BlockSpec((nb, C, 2 * P), lambda b: (b, 0, 0))
    out_shape = jax.ShapeDtypeStruct((B, C, 2 * P), jnp.float32)

    fn = pl.pallas_call(
        _multi_attn_kernel,
        grid=grid,
        in_specs=in_specs,
        out_specs=out_specs,
        out_shape=out_shape,
        compiler_params=pltpu.CompilerParams(
            dimension_semantics=("parallel",)),
    )
    return fn(x3, y3, consts['sel'], consts['emask'],
              consts['wx_t'], consts['bx'], consts['wy_t'], consts['by'],
              consts['ascale'], consts['bscale'])


# ----------------------------------------------------------------------------
# Host-side constant preparation (done once)
# ----------------------------------------------------------------------------
def prepare_constants(params, H, W, pool_ksize=2):
    k = pool_ksize
    assert H % k == 0 and W % k == 0
    Ph, Pw = H // k, W // k
    P = Ph * Pw
    nP = 3 * P
    k2 = k * k

    # Corner-selection matrix: x(C,HW) @ sel -> k*k "corner images", each (C,P).
    sel = np.zeros((H * W, k2 * P), np.float32)
    for i in range(Ph):
        for j in range(Pw):
            p = i * Pw + j
            for a in range(k):
                for b in range(k):
                    sel[(k * i + a) * W + (k * j + b), (a * k + b) * P + p] = 1.0

    pool_id = np.arange(nP) // P
    emask = np.where(pool_id[:, None] == pool_id[None, :], 0.0, -1e9).astype(np.float32)

    wx_t = jnp.concatenate([params['wk'], params['wv1']], axis=1).T.astype(jnp.bfloat16)
    wy_t = jnp.concatenate([params['wq'], params['wv2']], axis=1).T.astype(jnp.bfloat16)
    bx = jnp.concatenate([params['bk'], params['bv1']], axis=1).T.astype(jnp.float32)
    by = jnp.concatenate([params['bq'], params['bv2']], axis=1).T.astype(jnp.float32)
    ascale = (jnp.repeat(params['acoef'], P) / 3.0)[None, :].astype(jnp.float32)
    bscale = (jnp.repeat(params['bcoef'], P) / 3.0)[None, :].astype(jnp.float32)

    return {'sel': jnp.asarray(sel), 'emask': jnp.asarray(emask),
            'wx_t': wx_t, 'wy_t': wy_t, 'bx': bx, 'by': by,
            'ascale': ascale, 'bscale': bscale}


# ----------------------------------------------------------------------------
# Plain-JAX glue (ConvTranspose2d + residual) and full forward
# ----------------------------------------------------------------------------
def conv_transpose2d(x, w, b, stride=2, padding=1):
    """PyTorch ConvTranspose2d. x: (B,Cin,H,W); w: (Cin,Cout,kH,kW); b: (Cout,)."""
    k = w.shape[2]
    w_flip = w[:, :, ::-1, ::-1]
    w_oihw = jnp.transpose(w_flip, (1, 0, 2, 3))             # (Cout, Cin, kH, kW)
    pad = k - 1 - padding
    out = lax.conv_general_dilated(
        x, w_oihw, window_strides=(1, 1),
        padding=((pad, pad), (pad, pad)),
        lhs_dilation=(stride, stride),
        dimension_numbers=('NCHW', 'OIHW', 'NCHW'))
    return out + b[None, :, None, None]


@functools.partial(jax.jit, static_argnames=("sampling", "pool_ksize", "batch_block"))
def multi_attn_forward(x, y, params, consts, *, sampling='up', pool_ksize=2, batch_block=1):
    """Matches Multi_Attn.forward for sampling='up'."""
    if sampling == 'down':
        # TODO(synk): original 'down' config is shape-inconsistent at the residual add.
        raise NotImplementedError("only the self-consistent sampling='up' path is implemented")
    B, C, H, W = x.shape
    Ph, Pw = H // pool_ksize, W // pool_ksize
    P = Ph * Pw

    out = pooled_attention(x.reshape(B, C, H * W), y.reshape(B, C, H * W),
                           consts, batch_block)               # (B, C, 2P)
    out1 = out[:, :, :P].reshape(B, C, Ph, Pw)
    out2 = out[:, :, P:].reshape(B, C, Ph, Pw)

    # TODO(synk): the ConvTranspose2d + gamma*out + residual epilogue stays in XLA;
    # folding it into the kernel (col2im phase matmuls) is the next fusion step.
    out1 = conv_transpose2d(out1, params['w_d11'], params['b_d11'])
    out2 = conv_transpose2d(out2, params['w_d21'], params['b_d21'])
    # (pool_ksize == 4 would apply the second deconvs; not used in this config)

    out1 = params['gamma1'] * out1 + x
    out2 = params['gamma2'] * out2 + y
    return out1, out2


# ----------------------------------------------------------------------------
# Reference (pure JAX, mirrors the torch math) and parameter init
# ----------------------------------------------------------------------------
def reference_forward(x, y, params, pool_ksize=2):
    B, C, H, W = x.shape
    x_pro, y_pro = x, y
    k = pool_ksize

    def pools(t):
        tr = t.reshape(B, C, H // k, k, W // k, k)
        return [tr.max(axis=(3, 5)), tr.mean(axis=(3, 5)),
                jnp.sqrt((tr ** 2).sum(axis=(3, 5)))]

    xs, ys = pools(x), pools(y)
    xo, yo = [], []
    for xpool, ypool in zip(xs, ys):
        Ph, Pw = xpool.shape[2], xpool.shape[3]
        P = Ph * Pw

        def c1x1(t, w, bb):
            tf = t.reshape(B, C, P)
            return jnp.einsum('bcp,cd->bdp', tf, w) + bb.reshape(1, -1, 1)

        q = c1x1(ypool, params['wq'], params['bq'])
        kk = c1x1(xpool, params['wk'], params['bk'])
        v1 = c1x1(xpool, params['wv1'], params['bv1'])
        v2 = c1x1(ypool, params['wv2'], params['bv2'])
        energy = jnp.einsum('bci,bcj->bij', q, kk)
        att1 = jax.nn.softmax(energy, axis=-1)
        att2 = jax.nn.softmax(energy, axis=1)
        outx = jnp.einsum('bci,bij->bcj', v1, att2)
        outy = jnp.einsum('bcj,bij->bci', v2, att1)
        xo.append(outx.reshape(B, C, Ph, Pw))
        yo.append(outy.reshape(B, C, Ph, Pw))

    a = params['acoef'][0] * xo[0] + params['acoef'][1] * xo[1] + params['acoef'][2] * xo[2]
    b = params['bcoef'][0] * yo[0] + params['bcoef'][1] * yo[1] + params['bcoef'][2] * yo[2]
    out1, out2 = a / 3.0, b / 3.0
    out1 = conv_transpose2d(out1, params['w_d11'], params['b_d11'])
    out2 = conv_transpose2d(out2, params['w_d21'], params['b_d21'])
    out1 = params['gamma1'] * out1 + x_pro
    out2 = params['gamma2'] * out2 + y_pro
    return out1, out2


def init_params(key, in_dim, down_ch=1, dconv_dim=1):
    C = in_dim
    Cq = in_dim // down_ch
    ks = jax.random.split(key, 12)
    s = 0.1
    n = lambda k, shp: s * jax.random.normal(k, shp, jnp.float32)
    return {
        # 1x1 conv weights stored channel-last: (Cin, Cout); biases (1, Cout)
        'wq':  n(ks[0], (C, Cq)),  'bq':  n(ks[1], (1, Cq)),
        'wk':  n(ks[2], (C, Cq)),  'bk':  n(ks[3], (1, Cq)),
        'wv1': n(ks[4], (C, C)),   'bv1': n(ks[5], (1, C)),
        'wv2': n(ks[6], (C, C)),   'bv2': n(ks[7], (1, C)),
        # ConvTranspose2d weights in PyTorch layout (Cin, Cout, kH, kW)
        'w_d11': n(ks[8], (C, C * dconv_dim, 4, 4)),
        'b_d11': n(ks[9], (C * dconv_dim,)),
        'w_d21': n(ks[10], (C, C * dconv_dim, 4, 4)),
        'b_d21': n(ks[11], (C * dconv_dim,)),
        # a1..a3 / b1..b3 (torch inits to 1; distinct values exercise the fusion)
        'acoef': jnp.array([1.0, 0.7, 0.4], jnp.float32),
        'bcoef': jnp.array([0.9, 0.6, 0.3], jnp.float32),
        # gamma1/gamma2 (torch inits to 0; nonzero here to exercise the residual path)
        'gamma1': jnp.float32(0.1),
        'gamma2': jnp.float32(0.2),
    }


if __name__ == "__main__":
    key = jax.random.PRNGKey(0)
    B, C, H, W = 2, 16, 16, 16          # in_dim=16, spatial 16x16, pool_ksize=2 -> P=64
    kx, ky, kp = jax.random.split(key, 3)
    x = jax.random.normal(kx, (B, C, H, W), jnp.float32)
    y = jax.random.normal(ky, (B, C, H, W), jnp.float32)
    params = init_params(kp, C)
    consts = prepare_constants(params, H, W, pool_ksize=2)
    nb = _batch_block(B)

    out1, out2 = multi_attn_forward(x, y, params, consts,
                                    sampling='up', pool_ksize=2, batch_block=nb)
    jax.block_until_ready((out1, out2))

    r1, r2 = reference_forward(x, y, params, pool_ksize=2)
    assert out1.shape == (B, C, H, W) and out2.shape == (B, C, H, W)
    # tolerance accounts for bf16 MXU operands (f32 accumulation) in the kernel
    np.testing.assert_allclose(np.asarray(out1), np.asarray(r1), rtol=2e-3, atol=2e-3)
    np.testing.assert_allclose(np.asarray(out2), np.asarray(r2), rtol=2e-3, atol=2e-3)
    print("KERNEL_OK")
</pallas_src>

<mosaic_0001>
module attributes {stable_mosaic.version = 11 : i64} {
  func.func @_multi_attn_kernel(%arg0: i32, %arg1: memref<1x16x256xf32, #tpu.memory_space<vmem>>, %arg2: memref<1x16x256xf32, #tpu.memory_space<vmem>>, %arg3: memref<256x256xf32, #tpu.memory_space<vmem>>, %arg4: memref<192x192xf32, #tpu.memory_space<vmem>>, %arg5: memref<32x16xbf16, #tpu.memory_space<vmem>>, %arg6: memref<32x1xf32, #tpu.memory_space<vmem>>, %arg7: memref<32x16xbf16, #tpu.memory_space<vmem>>, %arg8: memref<32x1xf32, #tpu.memory_space<vmem>>, %arg9: memref<1x192xf32, #tpu.memory_space<vmem>>, %arg10: memref<1x192xf32, #tpu.memory_space<vmem>>, %arg11: memref<1x16x128xf32, #tpu.memory_space<vmem>>) attributes {dimension_semantics = [#tpu.dimension_semantics<parallel>], iteration_bounds = array<i64: 2>, scalar_prefetch = 0 : i64, scratch_operands = 0 : i64, tpu.core_type = #tpu.core_type<tc>, window_params = [{transform_indices = @transform_0, window_bounds = array<i64: 1, 16, 256>}, {transform_indices = @transform_1, window_bounds = array<i64: 1, 16, 256>}, {pipeline_mode = #tpu.pipeline_mode<synchronous>, transform_indices = @transform_2, window_bounds = array<i64: 256, 256>}, {pipeline_mode = #tpu.pipeline_mode<synchronous>, transform_indices = @transform_3, window_bounds = array<i64: 192, 192>}, {pipeline_mode = #tpu.pipeline_mode<synchronous>, transform_indices = @transform_4, window_bounds = array<i64: 32, 16>}, {pipeline_mode = #tpu.pipeline_mode<synchronous>, transform_indices = @transform_5, window_bounds = array<i64: 32, 1>}, {pipeline_mode = #tpu.pipeline_mode<synchronous>, transform_indices = @transform_6, window_bounds = array<i64: 32, 16>}, {pipeline_mode = #tpu.pipeline_mode<synchronous>, transform_indices = @transform_7, window_bounds = array<i64: 32, 1>}, {pipeline_mode = #tpu.pipeline_mode<synchronous>, transform_indices = @transform_8, window_bounds = array<i64: 1, 192>}, {pipeline_mode = #tpu.pipeline_mode<synchronous>, transform_indices = @transform_9, window_bounds = array<i64: 1, 192>}, {transform_indices = @transform_10, window_bounds = array<i64: 1, 16, 128>}]} {
    %c0 = arith.constant 0 : index
    %c0_0 = arith.constant 0 : index
    %0 = vector.load %arg3[%c0, %c0_0] : memref<256x256xf32, #tpu.memory_space<vmem>>, vector<256x256xf32>
    %c0_1 = arith.constant 0 : index
    %c0_2 = arith.constant 0 : index
    %1 = vector.load %arg4[%c0_1, %c0_2] : memref<192x192xf32, #tpu.memory_space<vmem>>, vector<192x192xf32>
    %c0_3 = arith.constant 0 : index
    %c0_4 = arith.constant 0 : index
    %2 = vector.load %arg5[%c0_3, %c0_4] : memref<32x16xbf16, #tpu.memory_space<vmem>>, vector<32x16xbf16>
    %c0_5 = arith.constant 0 : index
    %c0_6 = arith.constant 0 : index
    %3 = vector.load %arg7[%c0_5, %c0_6] : memref<32x16xbf16, #tpu.memory_space<vmem>>, vector<32x16xbf16>
    %c0_7 = arith.constant 0 : index
    %c0_8 = arith.constant 0 : index
    %4 = vector.load %arg6[%c0_7, %c0_8] : memref<32x1xf32, #tpu.memory_space<vmem>>, vector<32x1xf32>
    %c0_9 = arith.constant 0 : index
    %c0_10 = arith.constant 0 : index
    %5 = vector.load %arg8[%c0_9, %c0_10] : memref<32x1xf32, #tpu.memory_space<vmem>>, vector<32x1xf32>
    %c0_11 = arith.constant 0 : index
    %c0_12 = arith.constant 0 : index
    %6 = vector.load %arg9[%c0_11, %c0_12] : memref<1x192xf32, #tpu.memory_space<vmem>>, vector<1x192xf32>
    %c0_13 = arith.constant 0 : index
    %c0_14 = arith.constant 0 : index
    %7 = vector.load %arg10[%c0_13, %c0_14] : memref<1x192xf32, #tpu.memory_space<vmem>>, vector<1x192xf32>
    %c0_15 = arith.constant 0 : index
    %c0_16 = arith.constant 0 : index
    %c0_17 = arith.constant 0 : index
    %8 = vector.load %arg1[%c0_15, %c0_16, %c0_17] : memref<1x16x256xf32, #tpu.memory_space<vmem>>, vector<1x16x256xf32>
    %9 = vector.shape_cast %8 : vector<1x16x256xf32> to vector<16x256xf32>
    %cst = arith.constant dense<0.000000e+00> : vector<16x256xf32>
    %10 = tpu.matmul %9, %0, %cst {dimension_numbers = #tpu.dot_dimension_numbers<[1], [0], [0], [1], [0, 0, 1, 1], [], []>} : vector<16x256xf32>, vector<256x256xf32>, vector<16x256xf32> -> vector<16x256xf32>
    %11 = vector.extract_strided_slice %10 {offsets = [0, 0], sizes = [16, 64], strides = [1, 1]} : vector<16x256xf32> to vector<16x64xf32>
    %12 = vector.extract_strided_slice %10 {offsets = [0, 64], sizes = [16, 64], strides = [1, 1]} : vector<16x256xf32> to vector<16x64xf32>
    %13 = vector.extract_strided_slice %10 {offsets = [0, 128], sizes = [16, 64], strides = [1, 1]} : vector<16x256xf32> to vector<16x64xf32>
    %14 = vector.extract_strided_slice %10 {offsets = [0, 192], sizes = [16, 64], strides = [1, 1]} : vector<16x256xf32> to vector<16x64xf32>
    %15 = arith.mulf %11, %11 : vector<16x64xf32>
    %16 = arith.maximumf %11, %12 : vector<16x64xf32>
    %17 = arith.addf %11, %12 : vector<16x64xf32>
    %18 = arith.mulf %12, %12 : vector<16x64xf32>
    %19 = arith.addf %15, %18 : vector<16x64xf32>
    %20 = arith.maximumf %16, %13 : vector<16x64xf32>
    %21 = arith.addf %17, %13 : vector<16x64xf32>
    %22 = arith.mulf %13, %13 : vector<16x64xf32>
    %23 = arith.addf %19, %22 : vector<16x64xf32>
    %24 = arith.maximumf %20, %14 : vector<16x64xf32>
    %25 = arith.addf %21, %14 : vector<16x64xf32>
    %26 = arith.mulf %14, %14 : vector<16x64xf32>
    %27 = arith.addf %23, %26 : vector<16x64xf32>
    %cst_18 = arith.constant 2.500000e-01 : f32
    %28 = vector.broadcast %cst_18 : f32 to vector<16x64xf32>
    %29 = arith.mulf %25, %28 : vector<16x64xf32>
    %30 = math.sqrt %27 : vector<16x64xf32>
    %31 = tpu.concatenate %24, %29, %30 in 1 : vector<16x64xf32>, vector<16x64xf32>, vector<16x64xf32> -> vector<16x192xf32>
    %c0_19 = arith.constant 0 : index
    %c0_20 = arith.constant 0 : index
    %c0_21 = arith.constant 0 : index
    %32 = vector.load %arg2[%c0_19, %c0_20, %c0_21] : memref<1x16x256xf32, #tpu.memory_space<vmem>>, vector<1x16x256xf32>
    %33 = vector.shape_cast %32 : vector<1x16x256xf32> to vector<16x256xf32>
    %cst_22 = arith.constant dense<0.000000e+00> : vector<16x256xf32>
    %34 = tpu.matmul %33, %0, %cst_22 {dimension_numbers = #tpu.dot_dimension_numbers<[1], [0], [0], [1], [0, 0, 1, 1], [], []>} : vector<16x256xf32>, vector<256x256xf32>, vector<16x256xf32> -> vector<16x256xf32>
    %35 = vector.extract_strided_slice %34 {offsets = [0, 0], sizes = [16, 64], strides = [1, 1]} : vector<16x256xf32> to vector<16x64xf32>
    %36 = vector.extract_strided_slice %34 {offsets = [0, 64], sizes = [16, 64], strides = [1, 1]} : vector<16x256xf32> to vector<16x64xf32>
    %37 = vector.extract_strided_slice %34 {offsets = [0, 128], sizes = [16, 64], strides = [1, 1]} : vector<16x256xf32> to vector<16x64xf32>
    %38 = vector.extract_strided_slice %34 {offsets = [0, 192], sizes = [16, 64], strides = [1, 1]} : vector<16x256xf32> to vector<16x64xf32>
    %39 = arith.mulf %35, %35 : vector<16x64xf32>
    %40 = arith.maximumf %35, %36 : vector<16x64xf32>
    %41 = arith.addf %35, %36 : vector<16x64xf32>
    %42 = arith.mulf %36, %36 : vector<16x64xf32>
    %43 = arith.addf %39, %42 : vector<16x64xf32>
    %44 = arith.maximumf %40, %37 : vector<16x64xf32>
    %45 = arith.addf %41, %37 : vector<16x64xf32>
    %46 = arith.mulf %37, %37 : vector<16x64xf32>
    %47 = arith.addf %43, %46 : vector<16x64xf32>
    %48 = arith.maximumf %44, %38 : vector<16x64xf32>
    %49 = arith.addf %45, %38 : vector<16x64xf32>
    %50 = arith.mulf %38, %38 : vector<16x64xf32>
    %51 = arith.addf %47, %50 : vector<16x64xf32>
    %cst_23 = arith.constant 2.500000e-01 : f32
    %52 = vector.broadcast %cst_23 : f32 to vector<16x64xf32>
    %53 = arith.mulf %49, %52 : vector<16x64xf32>
    %54 = math.sqrt %51 : vector<16x64xf32>
    %55 = tpu.concatenate %48, %53, %54 in 1 : vector<16x64xf32>, vector<16x64xf32>, vector<16x64xf32> -> vector<16x192xf32>
    %56 = arith.truncf %31 : vector<16x192xf32> to vector<16x192xbf16>
    %cst_24 = arith.constant dense<0.000000e+00> : vector<32x192xf32>
    %57 = tpu.matmul %2, %56, %cst_24 {dimension_numbers = #tpu.dot_dimension_numbers<[1], [0], [0], [1], [0, 0, 1, 1], [], []>} : vector<32x16xbf16>, vector<16x192xbf16>, vector<32x192xf32> -> vector<32x192xf32>
    %58 = vector.broadcast %4 : vector<32x1xf32> to vector<32x192xf32>
    %59 = arith.addf %57, %58 : vector<32x192xf32>
    %60 = arith.truncf %55 : vector<16x192xf32> to vector<16x192xbf16>
    %cst_25 = arith.constant dense<0.000000e+00> : vector<32x192xf32>
    %61 = tpu.matmul %3, %60, %cst_25 {dimension_numbers = #tpu.dot_dimension_numbers<[1], [0], [0], [1], [0, 0, 1, 1], [], []>} : vector<32x16xbf16>, vector<16x192xbf16>, vector<32x192xf32> -> vector<32x192xf32>
    %62 = vector.broadcast %5 : vector<32x1xf32> to vector<32x192xf32>
    %63 = arith.addf %61, %62 : vector<32x192xf32>
    %64 = vector.extract_strided_slice %59 {offsets = [0, 0], sizes = [16, 192], strides = [1, 1]} : vector<32x192xf32> to vector<16x192xf32>
    %65 = vector.extract_strided_slice %59 {offsets = [16, 0], sizes = [16, 192], strides = [1, 1]} : vector<32x192xf32> to vector<16x192xf32>
    %66 = vector.broadcast %6 : vector<1x192xf32> to vector<16x192xf32>
    %67 = arith.mulf %65, %66 : vector<16x192xf32>
    %68 = vector.extract_strided_slice %63 {offsets = [0, 0], sizes = [16, 192], strides = [1, 1]} : vector<32x192xf32> to vector<16x192xf32>
    %69 = vector.extract_strided_slice %63 {offsets = [16, 0], sizes = [16, 192], strides = [1, 1]} : vector<32x192xf32> to vector<16x192xf32>
    %70 = vector.broadcast %7 : vector<1x192xf32> to vector<16x192xf32>
    %71 = arith.mulf %69, %70 : vector<16x192xf32>
    %72 = tpu.transpose %68, [1, 0] : vector<16x192xf32> -> vector<192x16xf32>
    %73 = arith.truncf %72 : vector<192x16xf32> to vector<192x16xbf16>
    %74 = arith.truncf %64 : vector<16x192xf32> to vector<16x192xbf16>
    %cst_26 = arith.constant dense<0.000000e+00> : vector<192x192xf32>
    %75 = tpu.matmul %73, %74, %cst_26 {dimension_numbers = #tpu.dot_dimension_numbers<[1], [0], [0], [1], [0, 0, 1, 1], [], []>} : vector<192x16xbf16>, vector<16x192xbf16>, vector<192x192xf32> -> vector<192x192xf32>
    %76 = arith.addf %75, %1 : vector<192x192xf32>
    %cst_27 = arith.constant dense<0xFF800000> : vector<192xf32>
    %77 = vector.multi_reduction <maximumf>, %76, %cst_27 [1] : vector<192x192xf32> to vector<192xf32>
    %78 = vector.shape_cast %77 : vector<192xf32> to vector<192x1xf32>
    %79 = vector.broadcast %78 : vector<192x1xf32> to vector<192x192xf32>
    %80 = arith.subf %76, %79 : vector<192x192xf32>
    %81 = math.exp %80 : vector<192x192xf32>
    %cst_28 = arith.constant dense<0.000000e+00> : vector<192xf32>
    %82 = vector.multi_reduction <add>, %81, %cst_28 [1] : vector<192x192xf32> to vector<192xf32>
    %83 = vector.shape_cast %82 : vector<192xf32> to vector<192x1xf32>
    %84 = tpu.reciprocal %83 : vector<192x1xf32> -> vector<192x1xf32>
    %85 = vector.broadcast %84 : vector<192x1xf32> to vector<192x192xf32>
    %86 = arith.mulf %81, %85 : vector<192x192xf32>
    %87 = tpu.transpose %76, [1, 0] : vector<192x192xf32> -> vector<192x192xf32>
    %cst_29 = arith.constant dense<0xFF800000> : vector<192xf32>
    %88 = vector.multi_reduction <maximumf>, %87, %cst_29 [1] : vector<192x192xf32> to vector<192xf32>
    %89 = vector.shape_cast %88 : vector<192xf32> to vector<192x1xf32>
    %90 = vector.broadcast %89 : vector<192x1xf32> to vector<192x192xf32>
    %91 = arith.subf %87, %90 : vector<192x192xf32>
    %92 = math.exp %91 : vector<192x192xf32>
    %cst_30 = arith.constant dense<0.000000e+00> : vector<192xf32>
    %93 = vector.multi_reduction <add>, %92, %cst_30 [1] : vector<192x192xf32> to vector<192xf32>
    %94 = vector.shape_cast %93 : vector<192xf32> to vector<192x1xf32>
    %95 = tpu.reciprocal %94 : vector<192x1xf32> -> vector<192x1xf32>
    %96 = vector.broadcast %95 : vector<192x1xf32> to vector<192x192xf32>
    %97 = arith.mulf %92, %96 : vector<192x192xf32>
    %98 = arith.truncf %67 : vector<16x192xf32> to vector<16x192xbf16>
    %99 = arith.truncf %97 : vector<192x192xf32> to vector<192x192xbf16>
    %cst_31 = arith.constant dense<0.000000e+00> : vector<16x192xf32>
    %100 = tpu.matmul %98, %99, %cst_31 {dimension_numbers = #tpu.dot_dimension_numbers<[1], [1], [0], [0], [0, 0, 1, 0], [], []>} : vector<16x192xbf16>, vector<192x192xbf16>, vector<16x192xf32> -> vector<16x192xf32>
    %101 = arith.truncf %71 : vector<16x192xf32> to vector<16x192xbf16>
    %102 = arith.truncf %86 : vector<192x192xf32> to vector<192x192xbf16>
    %cst_32 = arith.constant dense<0.000000e+00> : vector<16x192xf32>
    %103 = tpu.matmul %101, %102, %cst_32 {dimension_numbers = #tpu.dot_dimension_numbers<[1], [1], [0], [0], [0, 0, 1, 0], [], []>} : vector<16x192xbf16>, vector<192x192xbf16>, vector<16x192xf32> -> vector<16x192xf32>
    %104 = vector.extract_strided_slice %100 {offsets = [0, 0], sizes = [16, 64], strides = [1, 1]} : vector<16x192xf32> to vector<16x64xf32>
    %105 = vector.extract_strided_slice %100 {offsets = [0, 64], sizes = [16, 64], strides = [1, 1]} : vector<16x192xf32> to vector<16x64xf32>
    %106 = arith.addf %104, %105 : vector<16x64xf32>
    %107 = vector.extract_strided_slice %100 {offsets = [0, 128], sizes = [16, 64], strides = [1, 1]} : vector<16x192xf32> to vector<16x64xf32>
    %108 = arith.addf %106, %107 : vector<16x64xf32>
    %109 = vector.extract_strided_slice %103 {offsets = [0, 0], sizes = [16, 64], strides = [1, 1]} : vector<16x192xf32> to vector<16x64xf32>
    %110 = vector.extract_strided_slice %103 {offsets = [0, 64], sizes = [16, 64], strides = [1, 1]} : vector<16x192xf32> to vector<16x64xf32>
    %111 = arith.addf %109, %110 : vector<16x64xf32>
    %112 = vector.extract_strided_slice %103 {offsets = [0, 128], sizes = [16, 64], strides = [1, 1]} : vector<16x192xf32> to vector<16x64xf32>
    %113 = arith.addf %111, %112 : vector<16x64xf32>
    %114 = tpu.concatenate %108, %113 in 1 : vector<16x64xf32>, vector<16x64xf32> -> vector<16x128xf32>
    %c0_33 = arith.constant 0 : index
    %c0_34 = arith.constant 0 : index
    %c0_35 = arith.constant 0 : index
    %115 = vector.load %arg11[%c0_33, %c0_34, %c0_35] : memref<1x16x128xf32, #tpu.memory_space<vmem>>, vector<1x16x128xf32>
    %116 = vector.shape_cast %115 : vector<1x16x128xf32> to vector<16x128xf32>
    %117 = vector.shape_cast %114 : vector<16x128xf32> to vector<1x16x128xf32>
    tpu.vector_store %arg11[%c0_33, %c0_34, %c0_35], %117 {strides = array<i32>} : memref<1x16x128xf32, #tpu.memory_space<vmem>>, vector<1x16x128xf32>,
    return
  }
  func.func @transform_0(%arg0: i32) -> (i32, i32, i32) {
    %c0_i32 = arith.constant 0 : i32
    %c0_i32_0 = arith.constant 0 : i32
    %c0_i32_1 = arith.constant 0 : i32
    return %arg0, %c0_i32, %c0_i32_0 : i32, i32, i32
  }
  func.func @transform_1(%arg0: i32) -> (i32, i32, i32) {
    %c0_i32 = arith.constant 0 : i32
    %c0_i32_0 = arith.constant 0 : i32
    %c0_i32_1 = arith.constant 0 : i32
    return %arg0, %c0_i32, %c0_i32_0 : i32, i32, i32
  }
  func.func @transform_2(%arg0: i32) -> (i32, i32) {
    %c0_i32 = arith.constant 0 : i32
    %c0_i32_0 = arith.constant 0 : i32
    %c0_i32_1 = arith.constant 0 : i32
    return %c0_i32, %c0_i32_0 : i32, i32
  }
  func.func @transform_3(%arg0: i32) -> (i32, i32) {
    %c0_i32 = arith.constant 0 : i32
    %c0_i32_0 = arith.constant 0 : i32
    %c0_i32_1 = arith.constant 0 : i32
    return %c0_i32, %c0_i32_0 : i32, i32
  }
  func.func @transform_4(%arg0: i32) -> (i32, i32) {
    %c0_i32 = arith.constant 0 : i32
    %c0_i32_0 = arith.constant 0 : i32
    %c0_i32_1 = arith.constant 0 : i32
    return %c0_i32, %c0_i32_0 : i32, i32
  }
  func.func @transform_5(%arg0: i32) -> (i32, i32) {
    %c0_i32 = arith.constant 0 : i32
    %c0_i32_0 = arith.constant 0 : i32
    %c0_i32_1 = arith.constant 0 : i32
    return %c0_i32, %c0_i32_0 : i32, i32
  }
  func.func @transform_6(%arg0: i32) -> (i32, i32) {
    %c0_i32 = arith.constant 0 : i32
    %c0_i32_0 = arith.constant 0 : i32
    %c0_i32_1 = arith.constant 0 : i32
    return %c0_i32, %c0_i32_0 : i32, i32
  }
  func.func @transform_7(%arg0: i32) -> (i32, i32) {
    %c0_i32 = arith.constant 0 : i32
    %c0_i32_0 = arith.constant 0 : i32
    %c0_i32_1 = arith.constant 0 : i32
    return %c0_i32, %c0_i32_0 : i32, i32
  }
  func.func @transform_8(%arg0: i32) -> (i32, i32) {
    %c0_i32 = arith.constant 0 : i32
    %c0_i32_0 = arith.constant 0 : i32
    %c0_i32_1 = arith.constant 0 : i32
    return %c0_i32, %c0_i32_0 : i32, i32
  }
  func.func @transform_9(%arg0: i32) -> (i32, i32) {
    %c0_i32 = arith.constant 0 : i32
    %c0_i32_0 = arith.constant 0 : i32
    %c0_i32_1 = arith.constant 0 : i32
    return %c0_i32, %c0_i32_0 : i32, i32
  }
  func.func @transform_10(%arg0: i32) -> (i32, i32, i32) {
    %c0_i32 = arith.constant 0 : i32
    %c0_i32_0 = arith.constant 0 : i32
    %c0_i32_1 = arith.constant 0 : i32
    return %arg0, %c0_i32, %c0_i32_0 : i32, i32, i32
  }
}

</mosaic_0001>

<llo_original>
// kernel: multi_attn_forward.1
$region0: #{multi_attn_forward.1}
  #allocation0 [shape = 'u32[]', space=smem, size = 0x4, offset = 0x4, fixed_abs, tag = 'smem constant byte address 0x4 - core index']
  #allocation1 [shape = 'u32[144,128]{1,0:T(1,128)}', space=vmem, size = 0x12000, scoped, tag = 'internal scratch']
  %s0 = inlined_call_operand.vmem [shape: f32[2,16,256], index: 0, kind: input, shape index: {}]
  %s1 = inlined_call_operand.vmem [shape: f32[2,16,256], index: 1, kind: input, shape index: {}]
  %s2 = inlined_call_operand.vmem [shape: f32[256,256], index: 2, kind: input, shape index: {}]
  %s3 = inlined_call_operand.hbm [shape: f32[192,192], index: 3, kind: input, shape index: {}]
  %s4 = inlined_call_operand.vmem [shape: bf16[32,16], index: 4, kind: input, shape index: {}]
  %s5 = inlined_call_operand.vmem [shape: f32[32,1], index: 5, kind: input, shape index: {}]
  %s6 = inlined_call_operand.vmem [shape: bf16[32,16], index: 6, kind: input, shape index: {}]
  %s7 = inlined_call_operand.vmem [shape: f32[32,1], index: 7, kind: input, shape index: {}]
  %s8 = inlined_call_operand.vmem [shape: f32[1,192], index: 8, kind: input, shape index: {}]
  %s9 = inlined_call_operand.vmem [shape: f32[1,192], index: 9, kind: input, shape index: {}]
  %s10 = inlined_call_operand.vmem [shape: f32[2,16,128], index: 10, kind: output, shape index: {}]
  %s11 = sld [smem:[#allocation0]]
  $region77: #{multi_attn_forward.1} parent=0
    _
  %s13 = ssub.s32 1, %s11
  %s14 = scalar_select 0, %s13, %s11
  $region1: #{multi_attn_forward.1} parent=0
    #allocation2 [shape = 'u8[196608]{0}', space=vmem, size = 0x30000, scoped, tag = 'input window, operand 3, single buffered']
    #allocation3 [shape = 's32[2]{0}', space=sflag, size = 0x8, scoped, tag = 'scoped memory for multi_attn_forward.1']
    %15 = vsyncpa [#allocation3], 0
    loop: start=0, step=1, limit=4
    $region2: #{multi_attn_forward.1} parent=1 // loop_pre_header
      _
    $region3: #{multi_attn_forward.1} parent=1 // loop_header
      %s17 = sphi 0, %s21
      %p18 = scmp.ge.s32.totalorder %s17, 4
      %s27 = sphi 0, %s29
      %s30 = sphi 0, %s27
      %s31 = sphi 0, %s30
      %s47 = sphi 0, %s31
      %s53 = sphi 0, %s55
      %s56 = sphi 0, %s53
      %s57 = sphi 0, %s56
      %s73 = sphi 0, %s57
      %s77 = sphi 0, %s77
      %s79 = sphi 0, %s77
      %s80 = sphi 0, %s79
      %s94 = sphi 0, %s80
      %s98 = sphi 0, %s98
      %s100 = sphi 0, %s98
      %s101 = sphi 0, %s100
      %s115 = sphi 0, %s101
      %s119 = sphi 0, %s119
      %s121 = sphi 0, %s119
      %s122 = sphi 0, %s121
      %s136 = sphi 0, %s122
      %s140 = sphi 0, %s140
      %s142 = sphi 0, %s140
      %s143 = sphi 0, %s142
      %s157 = sphi 0, %s143
      %s161 = sphi 0, %s161
      %s163 = sphi 0, %s161
      %s164 = sphi 0, %s163
      %s178 = sphi 0, %s164
      %s182 = sphi 0, %s182
      %s184 = sphi 0, %s182
      %s185 = sphi 0, %s184
      %s199 = sphi 0, %s185
      %s203 = sphi 0, %s203
      %s205 = sphi 0, %s203
      %s206 = sphi 0, %s205
      %s220 = sphi 0, %s206
      %s224 = sphi 0, %s224
      %s226 = sphi 0, %s224
      %s227 = sphi 0, %s226
      %s241 = sphi 0, %s227
      %s247 = sphi 0, %s249
      %s250 = sphi 0, %s247
      %s251 = sphi 0, %s250
      %s267 = sphi 0, %s251
    $region4: #{multi_attn_forward.1} parent=1 // loop_header_branch
      %20 = sbr.rel (%p18) target = $region8
    $region5: #{multi_attn_forward.1} parent=1 // loop_body
      %s22 = ssub.s32 %s17, 1
      %s23 = ssub.s32 %s17, 2
      %s24 = sadd.s32 %s17, 1
      %s25 = ssub.s32 %s17, %s24
      %p26 = scmp.eq.s32.totalorder %s25, 0
      %s28 = sadd.s32 %s27, 1
      %s29 = scalar_select %p26, %s27, %s28
      %p32 = pneg %p26
      %p33 = scmp.eq.s32.totalorder %s17, 1
      %p34 = por %p32, %p33
      %p35 = scmp.ne.s32.totalorder %s27, %s30
      %p36 = scmp.eq.s32.totalorder %s17, 0
      %p37 = por %p35, %p36
      %p38 = scmp.ne.s32.totalorder %s27, %s30
      %p39 = scmp.eq.s32.totalorder %s22, 1
      %p40 = por %p38, %p39
      %p41 = scmp.ne.s32.totalorder %s30, %s31
      %p42 = scmp.eq.s32.totalorder %s22, 0
      %p43 = por %p41, %p42
      %p44 = scmp.ne.s32.totalorder %s30, %s31
      %p45 = scmp.eq.s32.totalorder %s23, 1
      %p46 = por %p44, %p45
      %p48 = scmp.ne.s32.totalorder %s31, %s47
      %p49 = scmp.eq.s32.totalorder %s23, 0
      %p50 = por %p48, %p49
      %s51 = ssub.s32 %s17, %s24
      %p52 = scmp.eq.s32.totalorder %s51, 0
      %s54 = sadd.s32 %s53, 1
      %s55 = scalar_select %p52, %s53, %s54
      %p58 = pneg %p52
      %p59 = scmp.eq.s32.totalorder %s17, 1
      %p60 = por %p58, %p59
      %p61 = scmp.ne.s32.totalorder %s53, %s56
      %p62 = scmp.eq.s32.totalorder %s17, 0
      %p63 = por %p61, %p62
      %p64 = scmp.ne.s32.totalorder %s53, %s56
      %p65 = scmp.eq.s32.totalorder %s22, 1
      %p66 = por %p64, %p65
      %p67 = scmp.ne.s32.totalorder %s56, %s57
      %p68 = scmp.eq.s32.totalorder %s22, 0
      %p69 = por %p67, %p68
      %p70 = scmp.ne.s32.totalorder %s56, %s57
      %p71 = scmp.eq.s32.totalorder %s23, 1
      %p72 = por %p70, %p71
      %p74 = scmp.ne.s32.totalorder %s57, %s73
      %p75 = scmp.eq.s32.totalorder %s23, 0
      %p76 = por %p74, %p75
      %s78 = sadd.s32 %s77, 1
      %p81 = scmp.eq.s32.totalorder %s17, 1
      %p82 = scmp.ne.s32.totalorder %s77, %s79
      %p83 = scmp.eq.s32.totalorder %s17, 0
      %p84 = por %p82, %p83
      %p85 = scmp.ne.s32.totalorder %s77, %s79
      %p86 = scmp.eq.s32.totalorder %s22, 1
      %p87 = por %p85, %p86
      %p88 = scmp.ne.s32.totalorder %s79, %s80
      %p89 = scmp.eq.s32.totalorder %s22, 0
      %p90 = por %p88, %p89
      %p91 = scmp.ne.s32.totalorder %s79, %s80
      %p92 = scmp.eq.s32.totalorder %s23, 1
      %p93 = por %p91, %p92
      %p95 = scmp.ne.s32.totalorder %s80, %s94
      %p96 = scmp.eq.s32.totalorder %s23, 0
      %p97 = por %p95, %p96
      %s99 = sadd.s32 %s98, 1
      %p102 = scmp.eq.s32.totalorder %s17, 1
      %p103 = scmp.ne.s32.totalorder %s98, %s100
      %p104 = scmp.eq.s32.totalorder %s17, 0
      %p105 = por %p103, %p104
      %p106 = scmp.ne.s32.totalorder %s98, %s100
      %p107 = scmp.eq.s32.totalorder %s22, 1
      %p108 = por %p106, %p107
      %p109 = scmp.ne.s32.totalorder %s100, %s101
      %p110 = scmp.eq.s32.totalorder %s22, 0
      %p111 = por %p109, %p110
      %p112 = scmp.ne.s32.totalorder %s100, %s101
      %p113 = scmp.eq.s32.totalorder %s23, 1
      %p114 = por %p112, %p113
      %p116 = scmp.ne.s32.totalorder %s101, %s115
      %p117 = scmp.eq.s32.totalorder %s23, 0
      %p118 = por %p116, %p117
      %s120 = sadd.s32 %s119, 1
      %p123 = scmp.eq.s32.totalorder %s17, 1
      %p124 = scmp.ne.s32.totalorder %s119, %s121
      %p125 = scmp.eq.s32.totalorder %s17, 0
      %p126 = por %p124, %p125
      %p127 = scmp.ne.s32.totalorder %s119, %s121
      %p128 = scmp.eq.s32.totalorder %s22, 1
      %p129 = por %p127, %p128
      %p130 = scmp.ne.s32.totalorder %s121, %s122
      %p131 = scmp.eq.s32.totalorder %s22, 0
      %p132 = por %p130, %p131
      %p133 = scmp.ne.s32.totalorder %s121, %s122
      %p134 = scmp.eq.s32.totalorder %s23, 1
      %p135 = por %p133, %p134
      %p137 = scmp.ne.s32.totalorder %s122, %s136
      %p138 = scmp.eq.s32.totalorder %s23, 0
      %p139 = por %p137, %p138
      %s141 = sadd.s32 %s140, 1
      %p144 = scmp.eq.s32.totalorder %s17, 1
      %p145 = scmp.ne.s32.totalorder %s140, %s142
      %p146 = scmp.eq.s32.totalorder %s17, 0
      %p147 = por %p145, %p146
      %p148 = scmp.ne.s32.totalorder %s140, %s142
      %p149 = scmp.eq.s32.totalorder %s22, 1
      %p150 = por %p148, %p149
      %p151 = scmp.ne.s32.totalorder %s142, %s143
      %p152 = scmp.eq.s32.totalorder %s22, 0
      %p153 = por %p151, %p152
      %p154 = scmp.ne.s32.totalorder %s142, %s143
      %p155 = scmp.eq.s32.totalorder %s23, 1
      %p156 = por %p154, %p155
      %p158 = scmp.ne.s32.totalorder %s143, %s157
      %p159 = scmp.eq.s32.totalorder %s23, 0
      %p160 = por %p158, %p159
      %s162 = sadd.s32 %s161, 1
      %p165 = scmp.eq.s32.totalorder %s17, 1
      %p166 = scmp.ne.s32.totalorder %s161, %s163
      %p167 = scmp.eq.s32.totalorder %s17, 0
      %p168 = por %p166, %p167
      %p169 = scmp.ne.s32.totalorder %s161, %s163
      %p170 = scmp.eq.s32.totalorder %s22, 1
      %p171 = por %p169, %p170
      %p172 = scmp.ne.s32.totalorder %s163, %s164
      %p173 = scmp.eq.s32.totalorder %s22, 0
      %p174 = por %p172, %p173
      %p175 = scmp.ne.s32.totalorder %s163, %s164
      %p176 = scmp.eq.s32.totalorder %s23, 1
      %p177 = por %p175, %p176
      %p179 = scmp.ne.s32.totalorder %s164, %s178
      %p180 = scmp.eq.s32.totalorder %s23, 0
      %p181 = por %p179, %p180
      %s183 = sadd.s32 %s182, 1
      %p186 = scmp.eq.s32.totalorder %s17, 1
      %p187 = scmp.ne.s32.totalorder %s182, %s184
      %p188 = scmp.eq.s32.totalorder %s17, 0
      %p189 = por %p187, %p188
      %p190 = scmp.ne.s32.totalorder %s182, %s184
      %p191 = scmp.eq.s32.totalorder %s22, 1
      %p192 = por %p190, %p191
      %p193 = scmp.ne.s32.totalorder %s184, %s185
      %p194 = scmp.eq.s32.totalorder %s22, 0
      %p195 = por %p193, %p194
      %p196 = scmp.ne.s32.totalorder %s184, %s185
      %p197 = scmp.eq.s32.totalorder %s23, 1
      %p198 = por %p196, %p197
      %p200 = scmp.ne.s32.totalorder %s185, %s199
      %p201 = scmp.eq.s32.totalorder %s23, 0
      %p202 = por %p200, %p201
      %s204 = sadd.s32 %s203, 1
      %p207 = scmp.eq.s32.totalorder %s17, 1
      %p208 = scmp.ne.s32.totalorder %s203, %s205
      %p209 = scmp.eq.s32.totalorder %s17, 0
      %p210 = por %p208, %p209
      %p211 = scmp.ne.s32.totalorder %s203, %s205
      %p212 = scmp.eq.s32.totalorder %s22, 1
      %p213 = por %p211, %p212
      %p214 = scmp.ne.s32.totalorder %s205, %s206
      %p215 = scmp.eq.s32.totalorder %s22, 0
      %p216 = por %p214, %p215
      %p217 = scmp.ne.s32.totalorder %s205, %s206
      %p218 = scmp.eq.s32.totalorder %s23, 1
      %p219 = por %p217, %p218
      %p221 = scmp.ne.s32.totalorder %s206, %s220
      %p222 = scmp.eq.s32.totalorder %s23, 0
      %p223 = por %p221, %p222
      %s225 = sadd.s32 %s224, 1
      %p228 = scmp.eq.s32.totalorder %s17, 1
      %p229 = scmp.ne.s32.totalorder %s224, %s226
      %p230 = scmp.eq.s32.totalorder %s17, 0
      %p231 = por %p229, %p230
      %p232 = scmp.ne.s32.totalorder %s224, %s226
      %p233 = scmp.eq.s32.totalorder %s22, 1
      %p234 = por %p232, %p233
      %p235 = scmp.ne.s32.totalorder %s226, %s227
      %p236 = scmp.eq.s32.totalorder %s22, 0
      %p237 = por %p235, %p236
      %p238 = scmp.ne.s32.totalorder %s226, %s227
      %p239 = scmp.eq.s32.totalorder %s23, 1
      %p240 = por %p238, %p239
      %p242 = scmp.ne.s32.totalorder %s227, %s241
      %p243 = scmp.eq.s32.totalorder %s23, 0
      %p244 = por %p242, %p243
      %s245 = ssub.s32 %s17, %s24
      %p246 = scmp.eq.s32.totalorder %s245, 0
      %s248 = sadd.s32 %s247, 1
      %s249 = scalar_select %p246, %s247, %s248
      %p252 = pneg %p246
      %p253 = scmp.eq.s32.totalorder %s17, 1
      %p254 = por %p252, %p253
      %p255 = scmp.ne.s32.totalorder %s247, %s250
      %p256 = scmp.eq.s32.totalorder %s17, 0
      %p257 = por %p255, %p256
      %p258 = scmp.ne.s32.totalorder %s247, %s250
      %p259 = scmp.eq.s32.totalorder %s22, 1
      %p260 = por %p258, %p259
      %p261 = scmp.ne.s32.totalorder %s250, %s251
      %p262 = scmp.eq.s32.totalorder %s22, 0
      %p263 = por %p261, %p262
      %p264 = scmp.ne.s32.totalorder %s250, %s251
      %p265 = scmp.eq.s32.totalorder %s23, 1
      %p266 = por %p264, %p265
      %p268 = scmp.ne.s32.totalorder %s251, %s267
      %p269 = scmp.eq.s32.totalorder %s23, 0
      %p270 = por %p268, %p269
      %p271 = scmp.le.s32.totalorder 1, %s17
      %p272 = scmp.lt.s32.totalorder %s17, 3
      %p273 = pnand %p271, %p272
      %p274 = pneg %p273
      // Predicated region
      $region9: #{multi_attn_forward.1} parent=5 // pred_check
        _
      $region10: #{multi_attn_forward.1} parent=5 // pred_check_branch
        %276 = sbr.rel (%p273) target = $region12
      $region11: #{multi_attn_forward.1} parent=5 // pred_region
        %s277 = ssub.s32 %s17, 1
        // Predicated region
        $region13: #{multi_attn_forward.1} parent=11 // pred_check
          %p278 = pneg %p90
        $region14: #{multi_attn_forward.1} parent=11 // pred_check_branch
          %280 = sbr.rel (%p278) target = $region16
        $region15: #{multi_attn_forward.1} parent=11 // pred_region
          _
        $region16: #{multi_attn_forward.1} parent=11 // pred_fallthru
          _
        // Predicated region
        $region17: #{multi_attn_forward.1} parent=11 // pred_check
          %p281 = pneg %p111
        $region18: #{multi_attn_forward.1} parent=11 // pred_check_branch
          %283 = sbr.rel (%p281) target = $region20
        $region19: #{multi_attn_forward.1} parent=11 // pred_region
          %s285 = ssub.s32 6144, 6144
          %286 = vsyncadd [#allocation3], %s285
          %s287 = sshll.u32 [#allocation2], 4
          %s288 = int_to_ptr.vmem [resolvable:$true] %s287
          %293 = dma.hbm_to_vmem [thread:$0]  %s3, 6144, %s288, [#allocation3], 256, 256, 16
        $region20: #{multi_attn_forward.1} parent=11 // pred_fallthru
          _
        // Predicated region
        $region21: #{multi_attn_forward.1} parent=11 // pred_check
          %p294 = pneg %p132
        $region22: #{multi_attn_forward.1} parent=11 // pred_check_branch
          %296 = sbr.rel (%p294) target = $region24
        $region23: #{multi_attn_forward.1} parent=11 // pred_region
          _
        $region24: #{multi_attn_forward.1} parent=11 // pred_fallthru
          _
        // Predicated region
        $region25: #{multi_attn_forward.1} parent=11 // pred_check
          %p297 = pneg %p153
        $region26: #{multi_attn_forward.1} parent=11 // pred_check_branch
          %299 = sbr.rel (%p297) target = $region28
        $region27: #{multi_attn_forward.1} parent=11 // pred_region
          _
        $region28: #{multi_attn_forward.1} parent=11 // pred_fallthru
          _
        // Predicated region
        $region29: #{multi_attn_forward.1} parent=11 // pred_check
          %p300 = pneg %p174
        $region30: #{multi_attn_forward.1} parent=11 // pred_check_branch
          %302 = sbr.rel (%p300) target = $region32
        $region31: #{multi_attn_forward.1} parent=11 // pred_region
          _
        $region32: #{multi_attn_forward.1} parent=11 // pred_fallthru
          _
        // Predicated region
        $region33: #{multi_attn_forward.1} parent=11 // pred_check
          %p303 = pneg %p195
        $region34: #{multi_attn_forward.1} parent=11 // pred_check_branch
          %305 = sbr.rel (%p303) target = $region36
        $region35: #{multi_attn_forward.1} parent=11 // pred_region
          _
        $region36: #{multi_attn_forward.1} parent=11 // pred_fallthru
          _
        // Predicated region
        $region37: #{multi_attn_forward.1} parent=11 // pred_check
          %p306 = pneg %p216
        $region38: #{multi_attn_forward.1} parent=11 // pred_check_branch
          %308 = sbr.rel (%p306) target = $region40
        $region39: #{multi_attn_forward.1} parent=11 // pred_region
          _
        $region40: #{multi_attn_forward.1} parent=11 // pred_fallthru
          _
        // Predicated region
        $region41: #{multi_attn_forward.1} parent=11 // pred_check
          %p309 = pneg %p237
        $region42: #{multi_attn_forward.1} parent=11 // pred_check_branch
          %311 = sbr.rel (%p309) target = $region44
        $region43: #{multi_attn_forward.1} parent=11 // pred_region
          _
        $region44: #{multi_attn_forward.1} parent=11 // pred_fallthru
          _
      $region12: #{multi_attn_forward.1} parent=5 // pred_fallthru
        _
      %p312 = scmp.lt.s32.totalorder %s17, 2
      // Predicated region
      $region45: #{multi_attn_forward.1} parent=5 // pred_check
        %p313 = pneg %p312
      $region46: #{multi_attn_forward.1} parent=5 // pred_check_branch
        %315 = sbr.rel (%p313) target = $region48
      $region47: #{multi_attn_forward.1} parent=5 // pred_region
        // Predicated region
        $region49: #{multi_attn_forward.1} parent=47 // pred_check
          %p316 = pneg %p37
        $region50: #{multi_attn_forward.1} parent=47 // pred_check_branch
          %318 = sbr.rel (%p316) target = $region52
        $region51: #{multi_attn_forward.1} parent=47 // pred_region
          %p319 = scmp.lt.s32.totalorder %s17, 1
          %s320 = scalar_select %p319, %s17, 1
          %s321 = smul.addr %s320, 4
          %s322 = smul.addr %s321, 8
          %s323 = scalar_lea.vmem %s0, %s322
        $region52: #{multi_attn_forward.1} parent=47 // pred_fallthru
          _
        // Predicated region
        $region53: #{multi_attn_forward.1} parent=47 // pred_check
          %p324 = pneg %p63
        $region54: #{multi_attn_forward.1} parent=47 // pred_check_branch
          %326 = sbr.rel (%p324) target = $region56
        $region55: #{multi_attn_forward.1} parent=47 // pred_region
          %p327 = scmp.lt.s32.totalorder %s17, 1
          %s328 = scalar_select %p327, %s17, 1
          %s329 = smul.addr %s328, 4
          %s330 = smul.addr %s329, 8
          %s331 = scalar_lea.vmem %s1, %s330
        $region56: #{multi_attn_forward.1} parent=47 // pred_fallthru
          _
      $region48: #{multi_attn_forward.1} parent=5 // pred_fallthru
        _
      %p332 = scmp.le.s32.totalorder 1, %s17
      %p333 = scmp.lt.s32.totalorder %s17, 3
      %p334 = pnand %p332, %p333
      %p335 = pneg %p334
      // Predicated region
      $region57: #{multi_attn_forward.1} parent=5 // pred_check
        _
      $region58: #{multi_attn_forward.1} parent=5 // pred_check_branch
        %337 = sbr.rel (%p334) target = $region60
      $region59: #{multi_attn_forward.1} parent=5 // pred_region
        %s338 = ssub.s32 %s17, 1
        // Predicated region
        $region61: #{multi_attn_forward.1} parent=59 // pred_check
          %p339 = pneg %p111
        $region62: #{multi_attn_forward.1} parent=59 // pred_check_branch
          %341 = sbr.rel (%p339) target = $region64
        $region63: #{multi_attn_forward.1} parent=59 // pred_region
          %342 = dma.done [#allocation3], 6144
        $region64: #{multi_attn_forward.1} parent=59 // pred_fallthru
          _
        %p343 = scmp.lt.s32.totalorder %s22, 1
        %s344 = scalar_select %p343, %s22, 1
        %s345 = smul.addr %s344, 4
        %s346 = smul.addr %s345, 8
        %s347 = scalar_lea.vmem %s0, %s346
        %p348 = pneg %p43
        %p349 = pneg %p40
        %p350 = scmp.lt.s32.totalorder %s22, 1
        %s351 = scalar_select %p350, %s22, 1
        %s352 = smul.addr %s351, 4
        %s353 = smul.addr %s352, 8
        %s354 = scalar_lea.vmem %s1, %s353
        %p355 = pneg %p69
        %p356 = pneg %p66
        %p357 = pneg %p90
        %p358 = pneg %p87
        %p359 = pneg %p111
        %p360 = pneg %p108
        %p361 = pneg %p132
        %p362 = pneg %p129
        %p363 = pneg %p153
        %p364 = pneg %p150
        %p365 = pneg %p174
        %p366 = pneg %p171
        %p367 = pneg %p195
        %p368 = pneg %p192
        %p369 = pneg %p216
        %p370 = pneg %p213
        %p371 = pneg %p237
        %p372 = pneg %p234
        %p373 = pneg %p263
        %p374 = pneg %p260
        %p375 = scmp.lt.s32.totalorder %s22, 1
        %s376 = scalar_select %p375, %s22, 1
        %s377 = smul.addr %s376, 2
        %s378 = smul.addr %s377, 8
        %s379 = scalar_lea.vmem %s10, %s378
        %p380 = scmp.lt.s32.totalorder %s22, 1
        %s381 = scalar_select %p380, %s22, 1
        %s382 = smul.addr %s381, 4
        %s383 = smul.addr %s382, 8
        %s384 = scalar_lea.vmem %s0, %s383
        %p385 = scmp.lt.s32.totalorder %s22, 1
        %s386 = scalar_select %p385, %s22, 1
        %s387 = smul.addr %s386, 4
        %s388 = smul.addr %s387, 8
        %s389 = scalar_lea.vmem %s1, %s388
        %p390 = scmp.lt.s32.totalorder %s22, 1
        %s391 = scalar_select %p390, %s22, 1
        %s392 = smul.addr %s391, 2
        %s393 = smul.addr %s392, 8
        %s394 = scalar_lea.vmem %s10, %s393
        %v396 = vld [vmem:[%s2] sm:$0xff]
        %v397 = vld [vmem:[%s2 + $0x8] sm:$0xff]
        %v398 = vld [vmem:[%s2 + $0x10] sm:$0xff]
        %v399 = vld [vmem:[%s2 + $0x18] sm:$0xff]
        %v400 = vld [vmem:[%s2 + $0x20] sm:$0xff]
        %v401 = vld [vmem:[%s2 + $0x28] sm:$0xff]
        %v402 = vld [vmem:[%s2 + $0x30] sm:$0xff]
        %v403 = vld [vmem:[%s2 + $0x38] sm:$0xff]
        %v404 = vld [vmem:[%s2 + $0x40] sm:$0xff]
        %v405 = vld [vmem:[%s2 + $0x48] sm:$0xff]
        %v406 = vld [vmem:[%s2 + $0x50] sm:$0xff]
        %v407 = vld [vmem:[%s2 + $0x58] sm:$0xff]
        %v408 = vld [vmem:[%s2 + $0x60] sm:$0xff]
        %v409 = vld [vmem:[%s2 + $0x68] sm:$0xff]
        %v410 = vld [vmem:[%s2 + $0x70] sm:$0xff]
        %v411 = vld [vmem:[%s2 + $0x78] sm:$0xff]
        %v412 = vld [vmem:[%s2 + $0x80] sm:$0xff]
        %v413 = vld [vmem:[%s2 + $0x88] sm:$0xff]
        %v414 = vld [vmem:[%s2 + $0x90] sm:$0xff]
        %v415 = vld [vmem:[%s2 + $0x98] sm:$0xff]
        %v416 = vld [vmem:[%s2 + $0xa0] sm:$0xff]
        %v417 = vld [vmem:[%s2 + $0xa8] sm:$0xff]
        %v418 = vld [vmem:[%s2 + $0xb0] sm:$0xff]
        %v419 = vld [vmem:[%s2 + $0xb8] sm:$0xff]
        %v420 = vld [vmem:[%s2 + $0xc0] sm:$0xff]
        %v421 = vld [vmem:[%s2 + $0xc8] sm:$0xff]
        %v422 = vld [vmem:[%s2 + $0xd0] sm:$0xff]
        %v423 = vld [vmem:[%s2 + $0xd8] sm:$0xff]
        %v424 = vld [vmem:[%s2 + $0xe0] sm:$0xff]
        %v425 = vld [vmem:[%s2 + $0xe8] sm:$0xff]
        %v426 = vld [vmem:[%s2 + $0xf0] sm:$0xff]
        %v427 = vld [vmem:[%s2 + $0xf8] sm:$0xff]
        %v428 = vld [vmem:[%s2 + $0x100] sm:$0xff]
        %v429 = vld [vmem:[%s2 + $0x108] sm:$0xff]
        %v430 = vld [vmem:[%s2 + $0x110] sm:$0xff]
        %v431 = vld [vmem:[%s2 + $0x118] sm:$0xff]
        %v432 = vld [vmem:[%s2 + $0x120] sm:$0xff]
        %v433 = vld [vmem:[%s2 + $0x128] sm:$0xff]
        %v434 = vld [vmem:[%s2 + $0x130] sm:$0xff]
        %v435 = vld [vmem:[%s2 + $0x138] sm:$0xff]
        %v436 = vld [vmem:[%s2 + $0x140] sm:$0xff]
        %v437 = vld [vmem:[%s2 + $0x148] sm:$0xff]
        %v438 = vld [vmem:[%s2 + $0x150] sm:$0xff]
        %v439 = vld [vmem:[%s2 + $0x158] sm:$0xff]
        %v440 = vld [vmem:[%s2 + $0x160] sm:$0xff]
        %v441 = vld [vmem:[%s2 + $0x168] sm:$0xff]
        %v442 = vld [vmem:[%s2 + $0x170] sm:$0xff]
        %v443 = vld [vmem:[%s2 + $0x178] sm:$0xff]
        %v444 = vld [vmem:[%s2 + $0x180] sm:$0xff]
        %v445 = vld [vmem:[%s2 + $0x188] sm:$0xff]
        %v446 = vld [vmem:[%s2 + $0x190] sm:$0xff]
        %v447 = vld [vmem:[%s2 + $0x198] sm:$0xff]
        %v448 = vld [vmem:[%s2 + $0x1a0] sm:$0xff]
        %v449 = vld [vmem:[%s2 + $0x1a8] sm:$0xff]
        %v450 = vld [vmem:[%s2 + $0x1b0] sm:$0xff]
        %v451 = vld [vmem:[%s2 + $0x1b8] sm:$0xff]
        %v452 = vld [vmem:[%s2 + $0x1c0] sm:$0xff]
        %v453 = vld [vmem:[%s2 + $0x1c8] sm:$0xff]
        %v454 = vld [vmem:[%s2 + $0x1d0] sm:$0xff]
        %v455 = vld [vmem:[%s2 + $0x1d8] sm:$0xff]
        %v456 = vld [vmem:[%s2 + $0x1e0] sm:$0xff]
        %v457 = vld [vmem:[%s2 + $0x1e8] sm:$0xff]
        %v458 = vld [vmem:[%s2 + $0x1f0] sm:$0xff]
        %v459 = vld [vmem:[%s2 + $0x1f8] sm:$0xff]
        %v460 = vld [vmem:[#allocation2] sm:$0xff]
        %v461 = vld [vmem:[#allocation2 + $0x8] sm:$0xff]
        %v462 = vld [vmem:[#allocation2 + $0x10] sm:$0xff]
        %v463 = vld [vmem:[#allocation2 + $0x18] sm:$0xff]
        %v464 = vld [vmem:[#allocation2 + $0x20] sm:$0xff]
        %v465 = vld [vmem:[#allocation2 + $0x28] sm:$0xff]
        %v466 = vld [vmem:[#allocation2 + $0x30] sm:$0xff]
        %v467 = vld [vmem:[#allocation2 + $0x38] sm:$0xff]
        %v468 = vld [vmem:[#allocation2 + $0x40] sm:$0xff]
        %v469 = vld [vmem:[#allocation2 + $0x48] sm:$0xff]
        %v470 = vld [vmem:[#allocation2 + $0x50] sm:$0xff]
        %v471 = vld [vmem:[#allocation2 + $0x58] sm:$0xff]
        %v472 = vld [vmem:[#allocation2 + $0x60] sm:$0xff]
        %v473 = vld [vmem:[#allocation2 + $0x68] sm:$0xff]
        %v474 = vld [vmem:[#allocation2 + $0x70] sm:$0xff]
        %v475 = vld [vmem:[#allocation2 + $0x78] sm:$0xff]
        %v476 = vld [vmem:[#allocation2 + $0x80] sm:$0xff]
        %v477 = vld [vmem:[#allocation2 + $0x88] sm:$0xff]
        %v478 = vld [vmem:[#allocation2 + $0x90] sm:$0xff]
        %v479 = vld [vmem:[#allocation2 + $0x98] sm:$0xff]
        %v480 = vld [vmem:[#allocation2 + $0xa0] sm:$0xff]
        %v481 = vld [vmem:[#allocation2 + $0xa8] sm:$0xff]
        %v482 = vld [vmem:[#allocation2 + $0xb0] sm:$0xff]
        %v483 = vld [vmem:[#allocation2 + $0xb8] sm:$0xff]
        %v484 = vld [vmem:[#allocation2 + $0xc0] sm:$0xff]
        %v485 = vld [vmem:[#allocation2 + $0xc8] sm:$0xff]
        %v486 = vld [vmem:[#allocation2 + $0xd0] sm:$0xff]
        %v487 = vld [vmem:[#allocation2 + $0xd8] sm:$0xff]
        %v488 = vld [vmem:[#allocation2 + $0xe0] sm:$0xff]
        %v489 = vld [vmem:[#allocation2 + $0xe8] sm:$0xff]
        %v490 = vld [vmem:[#allocation2 + $0xf0] sm:$0xff]
        %v491 = vld [vmem:[#allocation2 + $0xf8] sm:$0xff]
        %v492 = vld [vmem:[#allocation2 + $0x100] sm:$0xff]
        %v493 = vld [vmem:[#allocation2 + $0x108] sm:$0xff]
        %v494 = vld [vmem:[#allocation2 + $0x110] sm:$0xff]
        %v495 = vld [vmem:[#allocation2 + $0x118] sm:$0xff]
        %v496 = vld [vmem:[#allocation2 + $0x120] sm:$0xff]
        %v497 = vld [vmem:[#allocation2 + $0x128] sm:$0xff]
        %v498 = vld [vmem:[#allocation2 + $0x130] sm:$0xff]
        %v499 = vld [vmem:[#allocation2 + $0x138] sm:$0xff]
        %v500 = vld [vmem:[#allocation2 + $0x140] sm:$0xff]
        %v501 = vld [vmem:[#allocation2 + $0x148] sm:$0xff]
        %v502 = vld [vmem:[#allocation2 + $0x150] sm:$0xff]
        %v503 = vld [vmem:[#allocation2 + $0x158] sm:$0xff]
        %v504 = vld [vmem:[#allocation2 + $0x160] sm:$0xff]
        %v505 = vld [vmem:[#allocation2 + $0x168] sm:$0xff]
        %v506 = vld [vmem:[#allocation2 + $0x170] sm:$0xff]
        %v507 = vld [vmem:[#allocation2 + $0x178] sm:$0xff]
        %v508 = vld [vmem:[%s4] sm:$0xf]
        %v509 = vld [vmem:[%s4 + $0x4] sm:$0xf]
        %v510 = vld [vmem:[%s4 + $0x8] sm:$0xf]
        %v511 = vld [vmem:[%s4 + $0xc] sm:$0xf]
        %v512 = vld [vmem:[%s6] sm:$0xf]
        %v513 = vld [vmem:[%s6 + $0x4] sm:$0xf]
        %v514 = vld [vmem:[%s6 + $0x8] sm:$0xf]
        %v515 = vld [vmem:[%s6 + $0xc] sm:$0xf]
        %v516 = vld [vmem:[%s5] sm:$0xff]
        %v517 = vld [vmem:[%s5 + $0x8] sm:$0xff]
        %v518 = vld [vmem:[%s5 + $0x10] sm:$0xff]
        %v519 = vld [vmem:[%s5 + $0x18] sm:$0xff]
        %v520 = vld [vmem:[%s7] sm:$0xff]
        %v521 = vld [vmem:[%s7 + $0x8] sm:$0xff]
        %v522 = vld [vmem:[%s7 + $0x10] sm:$0xff]
        %v523 = vld [vmem:[%s7 + $0x18] sm:$0xff]
        %v524 = vld [vmem:[%s8] sm:$0x3]
        %v525 = vld [vmem:[%s9] sm:$0x3]
        %v526 = vld [vmem:[%s384] sm:$0xff]
        %v527 = vld [vmem:[%s384 + $0x8] sm:$0xff]
        %v528 = vld [vmem:[%s384 + $0x10] sm:$0xff]
        %v529 = vld [vmem:[%s384 + $0x18] sm:$0xff]
        %530 = vmatprep.subr.mxu0 %v397
        %531 = vmatpush1.msra.mxu0 %v396
        %532 = vmatprep.subr.mxu0 %v399
        %533 = vmatpush1.msra.mxu0 %v398
        %534 = vmatprep.subr.mxu0 %v401
        %535 = vmatpush1.msra.mxu0 %v400
        %536 = vmatprep.subr.mxu0 %v403
        %537 = vmatpush1.msra.mxu0 %v402
        %538 = vmatprep.subr.mxu0 %v405
        %539 = vmatpush1.msra.mxu0 %v404
        %540 = vmatprep.subr.mxu0 %v407
        %541 = vmatpush1.msra.mxu0 %v406
        %542 = vmatprep.subr.mxu0 %v409
        %543 = vmatpush1.msra.mxu0 %v408
        %544 = vmatprep.subr.mxu0 %v411
        %545 = vmatpush1.msra.mxu0 %v410
        %546 = vmatprep.subr.mxu0 %v413
        %547 = vmatpush1.msra.mxu0 %v412
        %548 = vmatprep.subr.mxu0 %v415
        %549 = vmatpush1.msra.mxu0 %v414
        %550 = vmatprep.subr.mxu0 %v417
        %551 = vmatpush1.msra.mxu0 %v416
        %552 = vmatprep.subr.mxu0 %v419
        %553 = vmatpush1.msra.mxu0 %v418
        %554 = vmatprep.subr.mxu0 %v421
        %555 = vmatpush1.msra.mxu0 %v420
        %556 = vmatprep.subr.mxu0 %v423
        %557 = vmatpush1.msra.mxu0 %v422
        %558 = vmatprep.subr.mxu0 %v425
        %559 = vmatpush1.msra.mxu0 %v424
        %560 = vmatprep.subr.mxu0 %v427
        %561 = vmatpush1.msra.mxu0 %v426
        %562 = vmatprep.subr.mxu0 %v429
        %563 = vmatpush1.msra.mxu0 %v428
        %564 = vmatprep.subr.mxu0 %v431
        %565 = vmatpush1.msra.mxu0 %v430
        %566 = vmatprep.subr.mxu0 %v433
        %567 = vmatpush1.msra.mxu0 %v432
        %568 = vmatprep.subr.mxu0 %v435
        %569 = vmatpush1.msra.mxu0 %v434
        %570 = vmatprep.subr.mxu0 %v437
        %571 = vmatpush1.msra.mxu0 %v436
        %572 = vmatprep.subr.mxu0 %v439
        %573 = vmatpush1.msra.mxu0 %v438
        %574 = vmatprep.subr.mxu0 %v441
        %575 = vmatpush1.msra.mxu0 %v440
        %576 = vmatprep.subr.mxu0 %v443
        %577 = vmatpush1.msra.mxu0 %v442
        %578 = vmatprep.subr.mxu0 %v445
        %579 = vmatpush1.msra.mxu0 %v444
        %580 = vmatprep.subr.mxu0 %v447
        %581 = vmatpush1.msra.mxu0 %v446
        %582 = vmatprep.subr.mxu0 %v449
        %583 = vmatpush1.msra.mxu0 %v448
        %584 = vmatprep.subr.mxu0 %v451
        %585 = vmatpush1.msra.mxu0 %v450
        %586 = vmatprep.subr.mxu0 %v453
        %587 = vmatpush1.msra.mxu0 %v452
        %588 = vmatprep.subr.mxu0 %v455
        %589 = vmatpush1.msra.mxu0 %v454
        %590 = vmatprep.subr.mxu0 %v457
        %591 = vmatpush1.msra.mxu0 %v456
        %592 = vmatprep.subr.mxu0 %v459
        %593 = vmatpush1.msra.mxu0 %v458
        %594 = vmatprep.mubr.f32.mxu0 %v527
        %595 = vmatmul.mubr.f32.gmra.mrb[0].mxu0 %v526
        %v596 = vpop.f32.mrb[0].mxu0
        %v597 = vadd.f32 0.0, %v596
        %v598 = vpop.f32.mrb[0].mxu0
        %v599 = vadd.f32 0.0, %v598
        %600 = vmatprep.mubr.f32.mxu0 %v529
        %601 = vmatmul.mubr.f32.gmra.mrb[0].mxu0 %v528
        %v602 = vpop.f32.mrb[0].mxu0
        %v603 = vadd.f32 0.0, %v602
        %v604 = vpop.f32.mrb[0].mxu0
        %v605 = vadd.f32 0.0, %v604
        %606 = vdwg.mxu0
        %v607 = vmul.f32 %v597, %v597
        %v608 = vmul.f32 %v603, %v603
        %611 = vrot.lane.b32.xlu0 %v597, 64
        %v612 = vpop.permute.xlu0 %611
        %613 = vrot.lane.b32.xlu0 %v603, 64
        %v614 = vpop.permute.xlu0 %613
        %v617 = vmax.f32 %v597, %v612
        %v618 = vmax.f32 %v603, %v614
        %v619 = vadd.f32 %v597, %v612
        %v620 = vadd.f32 %v603, %v614
        %623 = vrot.lane.b32.xlu0 %v607, 64
        %v624 = vpop.permute.xlu0 %623
        %625 = vrot.lane.b32.xlu0 %v608, 64
        %v626 = vpop.permute.xlu0 %625
        %v629 = vadd.f32 %v607, %v624
        %v630 = vadd.f32 %v608, %v626
        %v631 = vmax.f32 %v617, %v599
        %v632 = vmax.f32 %v618, %v605
        %v633 = vadd.f32 %v619, %v599
        %v634 = vadd.f32 %v620, %v605
        %v635 = vmul.f32 %v599, %v599
        %v636 = vmul.f32 %v605, %v605
        %v637 = vadd.f32 %v629, %v635
        %v638 = vadd.f32 %v630, %v636
        %641 = vrot.lane.b32.xlu0 %v599, 64
        %v642 = vpop.permute.xlu0 %641
        %643 = vrot.lane.b32.xlu0 %v605, 64
        %v644 = vpop.permute.xlu0 %643
        %v647 = vmax.f32 %v631, %v642
        %v648 = vmax.f32 %v632, %v644
        %v649 = vadd.f32 %v633, %v642
        %v650 = vadd.f32 %v634, %v644
        %653 = vrot.lane.b32.xlu0 %v635, 64
        %v654 = vpop.permute.xlu0 %653
        %655 = vrot.lane.b32.xlu0 %v636, 64
        %v656 = vpop.permute.xlu0 %655
        %v659 = vadd.f32 %v637, %v654
        %v660 = vadd.f32 %v638, %v656
        %v661 = vmul.f32 %v649, 0.25
        %v662 = vmul.f32 %v650, 0.25
        %v663 = vrsqrt.pop %v659
        %v664 = vmul.f32 %v659, %v663
        %vm665 = vcmp.eq.f32.partialorder %v659, inf
        %v666 = vsel %vm665, %v659, %v664
        %vm667 = vcmp.eq.f32.partialorder %v659, 0.0
        %v668 = vand.u32 %v659, 2147483648
        %v669 = vsel %vm667, %v668, %v666
        %v670 = vrsqrt.pop %v660
        %v671 = vmul.f32 %v660, %v670
        %vm672 = vcmp.eq.f32.partialorder %v660, inf
        %v673 = vsel %vm672, %v660, %v671
        %vm674 = vcmp.eq.f32.partialorder %v660, 0.0
        %v675 = vand.u32 %v660, 2147483648
        %v676 = vsel %vm674, %v675, %v673
        %679 = vrot.lane.b32.xlu0 %v661, 64
        %v680 = vpop.permute.xlu0 %679
        %681 = vrot.lane.b32.xlu0 %v662, 64
        %v682 = vpop.permute.xlu0 %681
        %vm685 = vcmask 523264
        %v686 = vsel %vm685, %v647, %v680
        %v687 = vsel %vm685, %v648, %v682
        %v688 = vld [vmem:[%s389] sm:$0xff]
        %v689 = vld [vmem:[%s389 + $0x8] sm:$0xff]
        %v690 = vld [vmem:[%s389 + $0x10] sm:$0xff]
        %v691 = vld [vmem:[%s389 + $0x18] sm:$0xff]
        %692 = vmatprep.subr.mxu0 %v397
        %693 = vmatpush1.msra.mxu0 %v396
        %694 = vmatprep.subr.mxu0 %v399
        %695 = vmatpush1.msra.mxu0 %v398
        %696 = vmatprep.subr.mxu0 %v401
        %697 = vmatpush1.msra.mxu0 %v400
        %698 = vmatprep.subr.mxu0 %v403
        %699 = vmatpush1.msra.mxu0 %v402
        %700 = vmatprep.subr.mxu0 %v405
        %701 = vmatpush1.msra.mxu0 %v404
        %702 = vmatprep.subr.mxu0 %v407
        %703 = vmatpush1.msra.mxu0 %v406
        %704 = vmatprep.subr.mxu0 %v409
        %705 = vmatpush1.msra.mxu0 %v408
        %706 = vmatprep.subr.mxu0 %v411
        %707 = vmatpush1.msra.mxu0 %v410
        %708 = vmatprep.subr.mxu0 %v413
        %709 = vmatpush1.msra.mxu0 %v412
        %710 = vmatprep.subr.mxu0 %v415
        %711 = vmatpush1.msra.mxu0 %v414
        %712 = vmatprep.subr.mxu0 %v417
        %713 = vmatpush1.msra.mxu0 %v416
        %714 = vmatprep.subr.mxu0 %v419
        %715 = vmatpush1.msra.mxu0 %v418
        %716 = vmatprep.subr.mxu0 %v421
        %717 = vmatpush1.msra.mxu0 %v420
        %718 = vmatprep.subr.mxu0 %v423
        %719 = vmatpush1.msra.mxu0 %v422
        %720 = vmatprep.subr.mxu0 %v425
        %721 = vmatpush1.msra.mxu0 %v424
        %722 = vmatprep.subr.mxu0 %v427
        %723 = vmatpush1.msra.mxu0 %v426
        %724 = vmatprep.subr.mxu0 %v429
        %725 = vmatpush1.msra.mxu0 %v428
        %726 = vmatprep.subr.mxu0 %v431
        %727 = vmatpush1.msra.mxu0 %v430
        %728 = vmatprep.subr.mxu0 %v433
        %729 = vmatpush1.msra.mxu0 %v432
        %730 = vmatprep.subr.mxu0 %v435
        %731 = vmatpush1.msra.mxu0 %v434
        %732 = vmatprep.subr.mxu0 %v437
        %733 = vmatpush1.msra.mxu0 %v436
        %734 = vmatprep.subr.mxu0 %v439
        %735 = vmatpush1.msra.mxu0 %v438
        %736 = vmatprep.subr.mxu0 %v441
        %737 = vmatpush1.msra.mxu0 %v440
        %738 = vmatprep.subr.mxu0 %v443
        %739 = vmatpush1.msra.mxu0 %v442
        %740 = vmatprep.subr.mxu0 %v445
        %741 = vmatpush1.msra.mxu0 %v444
        %742 = vmatprep.subr.mxu0 %v447
        %743 = vmatpush1.msra.mxu0 %v446
        %744 = vmatprep.subr.mxu0 %v449
        %745 = vmatpush1.msra.mxu0 %v448
        %746 = vmatprep.subr.mxu0 %v451
        %747 = vmatpush1.msra.mxu0 %v450
        %748 = vmatprep.subr.mxu0 %v453
        %749 = vmatpush1.msra.mxu0 %v452
        %750 = vmatprep.subr.mxu0 %v455
        %751 = vmatpush1.msra.mxu0 %v454
        %752 = vmatprep.subr.mxu0 %v457
        %753 = vmatpush1.msra.mxu0 %v456
        %754 = vmatprep.subr.mxu0 %v459
        %755 = vmatpush1.msra.mxu0 %v458
        %756 = vmatprep.mubr.f32.mxu0 %v689
        %757 = vmatmul.mubr.f32.gmra.mrb[0].mxu0 %v688
        %v758 = vpop.f32.mrb[0].mxu0
        %v759 = vadd.f32 0.0, %v758
        %v760 = vpop.f32.mrb[0].mxu0
        %v761 = vadd.f32 0.0, %v760
        %762 = vmatprep.mubr.f32.mxu0 %v691
        %763 = vmatmul.mubr.f32.gmra.mrb[0].mxu0 %v690
        %v764 = vpop.f32.mrb[0].mxu0
        %v765 = vadd.f32 0.0, %v764
        %v766 = vpop.f32.mrb[0].mxu0
        %v767 = vadd.f32 0.0, %v766
        %768 = vdwg.mxu0
        %v769 = vmul.f32 %v759, %v759
        %v770 = vmul.f32 %v765, %v765
        %773 = vrot.lane.b32.xlu0 %v759, 64
        %v774 = vpop.permute.xlu0 %773
        %775 = vrot.lane.b32.xlu0 %v765, 64
        %v776 = vpop.permute.xlu0 %775
        %v779 = vmax.f32 %v759, %v774
        %v780 = vmax.f32 %v765, %v776
        %v781 = vadd.f32 %v759, %v774
        %v782 = vadd.f32 %v765, %v776
        %785 = vrot.lane.b32.xlu0 %v769, 64
        %v786 = vpop.permute.xlu0 %785
        %787 = vrot.lane.b32.xlu0 %v770, 64
        %v788 = vpop.permute.xlu0 %787
        %v791 = vadd.f32 %v769, %v786
        %v792 = vadd.f32 %v770, %v788
        %v793 = vmax.f32 %v779, %v761
        %v794 = vmax.f32 %v780, %v767
        %v795 = vadd.f32 %v781, %v761
        %v796 = vadd.f32 %v782, %v767
        %v797 = vmul.f32 %v761, %v761
        %v798 = vmul.f32 %v767, %v767
        %v799 = vadd.f32 %v791, %v797
        %v800 = vadd.f32 %v792, %v798
        %803 = vrot.lane.b32.xlu0 %v761, 64
        %v804 = vpop.permute.xlu0 %803
        %805 = vrot.lane.b32.xlu0 %v767, 64
        %v806 = vpop.permute.xlu0 %805
        %v809 = vmax.f32 %v793, %v804
        %v810 = vmax.f32 %v794, %v806
        %v811 = vadd.f32 %v795, %v804
        %v812 = vadd.f32 %v796, %v806
        %815 = vrot.lane.b32.xlu0 %v797, 64
        %v816 = vpop.permute.xlu0 %815
        %817 = vrot.lane.b32.xlu0 %v798, 64
        %v818 = vpop.permute.xlu0 %817
        %v821 = vadd.f32 %v799, %v816
        %v822 = vadd.f32 %v800, %v818
        %v823 = vmul.f32 %v811, 0.25
        %v824 = vmul.f32 %v812, 0.25
        %v825 = vrsqrt.pop %v821
        %v826 = vmul.f32 %v821, %v825
        %vm827 = vcmp.eq.f32.partialorder %v821, inf
        %v828 = vsel %vm827, %v821, %v826
        %vm829 = vcmp.eq.f32.partialorder %v821, 0.0
        %v830 = vand.u32 %v821, 2147483648
        %v831 = vsel %vm829, %v830, %v828
        %v832 = vrsqrt.pop %v822
        %v833 = vmul.f32 %v822, %v832
        %vm834 = vcmp.eq.f32.partialorder %v822, inf
        %v835 = vsel %vm834, %v822, %v833
        %vm836 = vcmp.eq.f32.partialorder %v822, 0.0
        %v837 = vand.u32 %v822, 2147483648
        %v838 = vsel %vm836, %v837, %v835
        %841 = vrot.lane.b32.xlu0 %v823, 64
        %v842 = vpop.permute.xlu0 %841
        %843 = vrot.lane.b32.xlu0 %v824, 64
        %v844 = vpop.permute.xlu0 %843
        %v847 = vsel %vm685, %v809, %v842
        %v848 = vsel %vm685, %v810, %v844
        %v849 = vpack.c.bf16 %v687, %v686
        %v850 = vpack.c.bf16 %v676, %v669
        %852 = vset.pattern.permute.xlu0 0
        %853 = vperm.xlu0 %852, %v516
        %v854 = vpop.permute.xlu0 %853
        %857 = vset.pattern.permute.xlu0 0
        %858 = vperm.xlu0 %857, %v517
        %v859 = vpop.permute.xlu0 %858
        %862 = vset.pattern.permute.xlu0 0
        %863 = vperm.xlu0 %862, %v518
        %v864 = vpop.permute.xlu0 %863
        %867 = vset.pattern.permute.xlu0 0
        %868 = vperm.xlu0 %867, %v519
        %v869 = vpop.permute.xlu0 %868
        %v875 = vunpack.c.l.b16 %v508
        %v876 = vunpack.c.l.b16 %v509
        %v877 = vunpack.c.l.b16 %v510
        %v878 = vunpack.c.l.b16 %v511
        %v879 = vpack.c.b16 %v876, %v875
        %v880 = vpack.c.b16 %v878, %v877
        %vm881 = vcmask 130048
        %v883 = vsel %vm881, %v879, 0
        %v886 = vsel %vm881, %v880, 0
        %888 = vmatprep.subr.bf16.mxu0 %v850
        %889 = vmatpush1.bf16.msra.mxu0 %v849
        %890 = vmatprep.subr.bf16.mxu0 0
        %891 = vmatpush1.bf16.msra.mxu0 0
        %892 = vmatprep.subr.bf16.mxu0 0
        %893 = vmatpush1.bf16.msra.mxu0 0
        %894 = vmatprep.subr.bf16.mxu0 0
        %895 = vmatpush1.bf16.msra.mxu0 0
        %896 = vmatprep.subr.bf16.mxu0 0
        %897 = vmatpush1.bf16.msra.mxu0 0
        %898 = vmatprep.subr.bf16.mxu0 0
        %899 = vmatpush1.bf16.msra.mxu0 0
        %900 = vmatprep.subr.bf16.mxu0 0
        %901 = vmatpush1.bf16.msra.mxu0 0
        %902 = vmatprep.subr.bf16.mxu0 0
        %903 = vmatpush1.bf16.msra.mxu0 0
        %904 = vmatprep.subr.bf16.mxu0 0
        %905 = vmatpush1.bf16.msra.mxu0 0
        %906 = vmatprep.subr.bf16.mxu0 0
        %907 = vmatpush1.bf16.msra.mxu0 0
        %908 = vmatprep.subr.bf16.mxu0 0
        %909 = vmatpush1.bf16.msra.mxu0 0
        %910 = vmatprep.subr.bf16.mxu0 0
        %911 = vmatpush1.bf16.msra.mxu0 0
        %912 = vmatprep.subr.bf16.mxu0 0
        %913 = vmatpush1.bf16.msra.mxu0 0
        %914 = vmatprep.subr.bf16.mxu0 0
        %915 = vmatpush1.bf16.msra.mxu0 0
        %916 = vmatprep.subr.bf16.mxu0 0
        %917 = vmatpush1.bf16.msra.mxu0 0
        %918 = vmatprep.subr.bf16.mxu0 0
        %919 = vmatpush1.bf16.msra.mxu0 0
        %920 = vmatprep.mubr.bf16.mxu0 0
        %921 = vmatmul.mubr.bf16.gmra.mrb[0].mxu0 %v883
        %v922 = vpop.f32.mrb[0].mxu0
        %v923 = vadd.f32 %v854, %v922
        %v924 = vpop.f32.mrb[0].mxu0
        %v925 = vadd.f32 %v854, %v924
        %v926 = vpop.f32.mrb[0].mxu0
        %v927 = vadd.f32 %v859, %v926
        %v928 = vpop.f32.mrb[0].mxu0
        %v929 = vadd.f32 %v859, %v928
        %930 = vmatprep.mubr.bf16.mxu0 0
        %931 = vmatmul.mubr.bf16.gmra.mrb[0].mxu0 %v886
        %v932 = vpop.f32.mrb[0].mxu0
        %v933 = vadd.f32 %v864, %v932
        %v934 = vpop.f32.mrb[0].mxu0
        %v935 = vadd.f32 %v864, %v934
        %v936 = vpop.f32.mrb[0].mxu0
        %v937 = vadd.f32 %v869, %v936
        %v938 = vpop.f32.mrb[0].mxu0
        %v939 = vadd.f32 %v869, %v938
        %940 = vdwg.mxu0
        %v941 = vpack.c.bf16 %v848, %v847
        %v942 = vpack.c.bf16 %v838, %v831
        %944 = vset.pattern.permute.xlu0 0
        %945 = vperm.xlu0 %944, %v520
        %v946 = vpop.permute.xlu0 %945
        %949 = vset.pattern.permute.xlu0 0
        %950 = vperm.xlu0 %949, %v521
        %v951 = vpop.permute.xlu0 %950
        %954 = vset.pattern.permute.xlu0 0
        %955 = vperm.xlu0 %954, %v522
        %v956 = vpop.permute.xlu0 %955
        %959 = vset.pattern.permute.xlu0 0
        %960 = vperm.xlu0 %959, %v523
        %v961 = vpop.permute.xlu0 %960
        %v967 = vunpack.c.l.b16 %v512
        %v968 = vunpack.c.l.b16 %v513
        %v969 = vunpack.c.l.b16 %v514
        %v970 = vunpack.c.l.b16 %v515
        %v971 = vpack.c.b16 %v968, %v967
        %v972 = vpack.c.b16 %v970, %v969
        %v974 = vsel %vm881, %v971, 0
        %v977 = vsel %vm881, %v972, 0
        %979 = vmatprep.subr.bf16.mxu0 %v942
        %980 = vmatpush1.bf16.msra.mxu0 %v941
        %981 = vmatprep.subr.bf16.mxu0 0
        %982 = vmatpush1.bf16.msra.mxu0 0
        %983 = vmatprep.subr.bf16.mxu0 0
        %984 = vmatpush1.bf16.msra.mxu0 0
        %985 = vmatprep.subr.bf16.mxu0 0
        %986 = vmatpush1.bf16.msra.mxu0 0
        %987 = vmatprep.subr.bf16.mxu0 0
        %988 = vmatpush1.bf16.msra.mxu0 0
        %989 = vmatprep.subr.bf16.mxu0 0
        %990 = vmatpush1.bf16.msra.mxu0 0
        %991 = vmatprep.subr.bf16.mxu0 0
        %992 = vmatpush1.bf16.msra.mxu0 0
        %993 = vmatprep.subr.bf16.mxu0 0
        %994 = vmatpush1.bf16.msra.mxu0 0
        %995 = vmatprep.subr.bf16.mxu0 0
        %996 = vmatpush1.bf16.msra.mxu0 0
        %997 = vmatprep.subr.bf16.mxu0 0
        %998 = vmatpush1.bf16.msra.mxu0 0
        %999 = vmatprep.subr.bf16.mxu0 0
        %1000 = vmatpush1.bf16.msra.mxu0 0
        %1001 = vmatprep.subr.bf16.mxu0 0
        %1002 = vmatpush1.bf16.msra.mxu0 0
        %1003 = vmatprep.subr.bf16.mxu0 0
        %1004 = vmatpush1.bf16.msra.mxu0 0
        %1005 = vmatprep.subr.bf16.mxu0 0
        %1006 = vmatpush1.bf16.msra.mxu0 0
        %1007 = vmatprep.subr.bf16.mxu0 0
        %1008 = vmatpush1.bf16.msra.mxu0 0
        %1009 = vmatprep.subr.bf16.mxu0 0
        %1010 = vmatpush1.bf16.msra.mxu0 0
        %1011 = vmatprep.mubr.bf16.mxu0 0
        %1012 = vmatmul.mubr.bf16.gmra.mrb[0].mxu0 %v974
        %v1013 = vpop.f32.mrb[0].mxu0
        %v1014 = vadd.f32 %v946, %v1013
        %v1015 = vpop.f32.mrb[0].mxu0
        %v1016 = vadd.f32 %v946, %v1015
        %v1017 = vpop.f32.mrb[0].mxu0
        %v1018 = vadd.f32 %v951, %v1017
        %v1019 = vpop.f32.mrb[0].mxu0
        %v1020 = vadd.f32 %v951, %v1019
        %1021 = vmatprep.mubr.bf16.mxu0 0
        %1022 = vmatmul.mubr.bf16.gmra.mrb[0].mxu0 %v977
        %v1023 = vpop.f32.mrb[0].mxu0
        %v1024 = vadd.f32 %v956, %v1023
        %v1025 = vpop.f32.mrb[0].mxu0
        %v1026 = vadd.f32 %v956, %v1025
        %v1027 = vpop.f32.mrb[0].mxu0
        %v1028 = vadd.f32 %v961, %v1027
        %v1029 = vpop.f32.mrb[0].mxu0
        %v1030 = vadd.f32 %v961, %v1029
        %1031 = vdwg.mxu0
        %v1033 = vlaneseq
        %v1034 = vshrl.u32 %v1033, 7
        %v1035 = vsub.s32 0, %v1034
        %v1036 = vrot.slane %v524, %v1035
        %v1037 = vlaneseq
        %v1038 = vshrl.u32 %v1037, 7
        %v1039 = vsub.s32 1, %v1038
        %v1040 = vrot.slane %v524, %v1039
        %v1043 = vmul.f32 %v933, %v1036
        %v1044 = vmul.f32 %v935, %v1040
        %v1045 = vmul.f32 %v937, %v1036
        %v1046 = vmul.f32 %v939, %v1040
        %v1048 = vlaneseq
        %v1049 = vshrl.u32 %v1048, 7
        %v1050 = vsub.s32 0, %v1049
        %v1051 = vrot.slane %v525, %v1050
        %v1052 = vlaneseq
        %v1053 = vshrl.u32 %v1052, 7
        %v1054 = vsub.s32 1, %v1053
        %v1055 = vrot.slane %v525, %v1054
        %v1058 = vmul.f32 %v1024, %v1051
        %v1059 = vmul.f32 %v1026, %v1055
        %v1060 = vmul.f32 %v1028, %v1051
        %v1061 = vmul.f32 %v1030, %v1055
        %1062 = vxpose.xlu0.b32.start [1/16] %v1014, 128
        %1063 = vxpose.xlu0.b32.cont [2/16] %v1018, 128
        %1064 = vxpose.xlu0.b32.cont [3/16] 0.0, 128
        %1065 = vxpose.xlu0.b32.cont [4/16] 0.0, 128
        %1066 = vxpose.xlu0.b32.cont [5/16] 0.0, 128
        %1067 = vxpose.xlu0.b32.cont [6/16] 0.0, 128
        %1068 = vxpose.xlu0.b32.cont [7/16] 0.0, 128
        %1069 = vxpose.xlu0.b32.cont [8/16] 0.0, 128
        %1070 = vxpose.xlu0.b32.cont [9/16] 0.0, 128
        %1071 = vxpose.xlu0.b32.cont [10/16] 0.0, 128
        %1072 = vxpose.xlu0.b32.cont [11/16] 0.0, 128
        %1073 = vxpose.xlu0.b32.cont [12/16] 0.0, 128
        %1074 = vxpose.xlu0.b32.cont [13/16] 0.0, 128
        %1075 = vxpose.xlu0.b32.cont [14/16] 0.0, 128
        %1076 = vxpose.xlu0.b32.cont [15/16] 0.0, 128
        %1077 = vxpose.xlu0.b32.end [16/16] 0.0, 128
        %v1078 = vpop.trf.xlu0
        %v1079 = vpop.trf.xlu0
        %v1080 = vpop.trf.xlu0
        %v1081 = vpop.trf.xlu0
        %v1082 = vpop.trf.xlu0
        %v1083 = vpop.trf.xlu0
        %v1084 = vpop.trf.xlu0
        %v1085 = vpop.trf.xlu0
        %v1086 = vpop.trf.xlu0
        %v1087 = vpop.trf.xlu0
        %v1088 = vpop.trf.xlu0
        %v1089 = vpop.trf.xlu0
        %v1090 = vpop.trf.xlu0
        %v1091 = vpop.trf.xlu0
        %v1092 = vpop.trf.xlu0
        %v1093 = vpop.trf.xlu0
        %1094 = vxpose.xlu0.b32.start [1/16] %v1016, 128
        %1095 = vxpose.xlu0.b32.cont [2/16] %v1020, 128
        %1096 = vxpose.xlu0.b32.cont [3/16] 0.0, 128
        %1097 = vxpose.xlu0.b32.cont [4/16] 0.0, 128
        %1098 = vxpose.xlu0.b32.cont [5/16] 0.0, 128
        %1099 = vxpose.xlu0.b32.cont [6/16] 0.0, 128
        %1100 = vxpose.xlu0.b32.cont [7/16] 0.0, 128
        %1101 = vxpose.xlu0.b32.cont [8/16] 0.0, 128
        %1102 = vxpose.xlu0.b32.cont [9/16] 0.0, 128
        %1103 = vxpose.xlu0.b32.cont [10/16] 0.0, 128
        %1104 = vxpose.xlu0.b32.cont [11/16] 0.0, 128
        %1105 = vxpose.xlu0.b32.cont [12/16] 0.0, 128
        %1106 = vxpose.xlu0.b32.cont [13/16] 0.0, 128
        %1107 = vxpose.xlu0.b32.cont [14/16] 0.0, 128
        %1108 = vxpose.xlu0.b32.cont [15/16] 0.0, 128
        %1109 = vxpose.xlu0.b32.end [16/16] 0.0, 128
        %v1110 = vpop.trf.xlu0
        %v1111 = vpop.trf.xlu0
        %v1112 = vpop.trf.xlu0
        %v1113 = vpop.trf.xlu0
        %v1114 = vpop.trf.xlu0
        %v1115 = vpop.trf.xlu0
        %v1116 = vpop.trf.xlu0
        %v1117 = vpop.trf.xlu0
        %v1118 = vpop.trf.xlu0
        %v1119 = vpop.trf.xlu0
        %v1120 = vpop.trf.xlu0
        %v1121 = vpop.trf.xlu0
        %v1122 = vpop.trf.xlu0
        %v1123 = vpop.trf.xlu0
        %v1124 = vpop.trf.xlu0
        %v1125 = vpop.trf.xlu0
        %v1126 = vpack.c.bf16 %v1079, %v1078
        %v1127 = vpack.c.bf16 %v1081, %v1080
        %v1128 = vpack.c.bf16 %v1083, %v1082
        %v1129 = vpack.c.bf16 %v1085, %v1084
        %v1130 = vpack.c.bf16 %v1087, %v1086
        %v1131 = vpack.c.bf16 %v1089, %v1088
        %v1132 = vpack.c.bf16 %v1091, %v1090
        %v1133 = vpack.c.bf16 %v1093, %v1092
        %v1134 = vpack.c.bf16 %v1111, %v1110
        %v1135 = vpack.c.bf16 %v1113, %v1112
        %v1136 = vpack.c.bf16 %v1115, %v1114
        %v1137 = vpack.c.bf16 %v1117, %v1116
        %v1138 = vpack.c.bf16 %v927, %v923
        %v1139 = vpack.c.bf16 %v929, %v925
        %v1141 = vsel %vm881, %v1126, 0
        %v1144 = vsel %vm881, %v1127, 0
        %v1147 = vsel %vm881, %v1128, 0
        %v1150 = vsel %vm881, %v1129, 0
        %v1153 = vsel %vm881, %v1130, 0
        %v1156 = vsel %vm881, %v1131, 0
        %v1159 = vsel %vm881, %v1132, 0
        %v1162 = vsel %vm881, %v1133, 0
        %v1165 = vsel %vm881, %v1134, 0
        %v1168 = vsel %vm881, %v1135, 0
        %v1171 = vsel %vm881, %v1136, 0
        %v1174 = vsel %vm881, %v1137, 0
        %1176 = vmatprep.subr.bf16.mxu0 %v1139
        %1177 = vmatpush1.bf16.msra.mxu0 %v1138
        %1178 = vmatprep.subr.bf16.mxu0 0
        %1179 = vmatpush1.bf16.msra.mxu0 0
        %1180 = vmatprep.subr.bf16.mxu0 0
        %1181 = vmatpush1.bf16.msra.mxu0 0
        %1182 = vmatprep.subr.bf16.mxu0 0
        %1183 = vmatpush1.bf16.msra.mxu0 0
        %1184 = vmatprep.subr.bf16.mxu0 0
        %1185 = vmatpush1.bf16.msra.mxu0 0
        %1186 = vmatprep.subr.bf16.mxu0 0
        %1187 = vmatpush1.bf16.msra.mxu0 0
        %1188 = vmatprep.subr.bf16.mxu0 0
        %1189 = vmatpush1.bf16.msra.mxu0 0
        %1190 = vmatprep.subr.bf16.mxu0 0
        %1191 = vmatpush1.bf16.msra.mxu0 0
        %1192 = vmatprep.subr.bf16.mxu0 0
        %1193 = vmatpush1.bf16.msra.mxu0 0
        %1194 = vmatprep.subr.bf16.mxu0 0
        %1195 = vmatpush1.bf16.msra.mxu0 0
        %1196 = vmatprep.subr.bf16.mxu0 0
        %1197 = vmatpush1.bf16.msra.mxu0 0
        %1198 = vmatprep.subr.bf16.mxu0 0
        %1199 = vmatpush1.bf16.msra.mxu0 0
        %1200 = vmatprep.subr.bf16.mxu0 0
        %1201 = vmatpush1.bf16.msra.mxu0 0
        %1202 = vmatprep.subr.bf16.mxu0 0
        %1203 = vmatpush1.bf16.msra.mxu0 0
        %1204 = vmatprep.subr.bf16.mxu0 0
        %1205 = vmatpush1.bf16.msra.mxu0 0
        %1206 = vmatprep.subr.bf16.mxu0 0
        %1207 = vmatpush1.bf16.msra.mxu0 0
        %1208 = vmatprep.mubr.bf16.mxu0 0
        %1209 = vmatmul.mubr.bf16.gmra.mrb[0].mxu0 %v1141
        %v1210 = vpop.f32.mrb[0].mxu0
        %v1211 = vadd.f32 %v460, %v1210
        %v1212 = vpop.f32.mrb[0].mxu0
        %v1213 = vadd.f32 %v461, %v1212
        %v1214 = vpop.f32.mrb[0].mxu0
        %v1215 = vadd.f32 %v462, %v1214
        %v1216 = vpop.f32.mrb[0].mxu0
        %v1217 = vadd.f32 %v463, %v1216
        %1218 = vmatprep.mubr.bf16.mxu0 0
        %1219 = vmatmul.mubr.bf16.gmra.mrb[0].mxu0 %v1144
        %v1220 = vpop.f32.mrb[0].mxu0
        %v1221 = vadd.f32 %v464, %v1220
        %v1222 = vpop.f32.mrb[0].mxu0
        %v1223 = vadd.f32 %v465, %v1222
        %v1224 = vpop.f32.mrb[0].mxu0
        %v1225 = vadd.f32 %v466, %v1224
        %v1226 = vpop.f32.mrb[0].mxu0
        %v1227 = vadd.f32 %v467, %v1226
        %1228 = vmatprep.mubr.bf16.mxu0 0
        %1229 = vmatmul.mubr.bf16.gmra.mrb[0].mxu0 %v1147
        %v1230 = vpop.f32.mrb[0].mxu0
        %v1231 = vadd.f32 %v468, %v1230
        %v1232 = vpop.f32.mrb[0].mxu0
        %v1233 = vadd.f32 %v469, %v1232
        %v1234 = vpop.f32.mrb[0].mxu0
        %v1235 = vadd.f32 %v470, %v1234
        %v1236 = vpop.f32.mrb[0].mxu0
        %v1237 = vadd.f32 %v471, %v1236
        %1238 = vmatprep.mubr.bf16.mxu0 0
        %1239 = vmatmul.mubr.bf16.gmra.mrb[0].mxu0 %v1150
        %v1240 = vpop.f32.mrb[0].mxu0
        %v1241 = vadd.f32 %v472, %v1240
        %v1242 = vpop.f32.mrb[0].mxu0
        %v1243 = vadd.f32 %v473, %v1242
        %v1244 = vpop.f32.mrb[0].mxu0
        %v1245 = vadd.f32 %v474, %v1244
        %v1246 = vpop.f32.mrb[0].mxu0
        %v1247 = vadd.f32 %v475, %v1246
        %1248 = vmatprep.mubr.bf16.mxu0 0
        %1249 = vmatmul.mubr.bf16.gmra.mrb[0].mxu0 %v1153
        %v1250 = vpop.f32.mrb[0].mxu0
        %v1251 = vadd.f32 %v476, %v1250
        %v1252 = vpop.f32.mrb[0].mxu0
        %v1253 = vadd.f32 %v477, %v1252
        %v1254 = vpop.f32.mrb[0].mxu0
        %v1255 = vadd.f32 %v478, %v1254
        %v1256 = vpop.f32.mrb[0].mxu0
        %v1257 = vadd.f32 %v479, %v1256
        %1258 = vmatprep.mubr.bf16.mxu0 0
        %1259 = vmatmul.mubr.bf16.gmra.mrb[0].mxu0 %v1156
        %v1260 = vpop.f32.mrb[0].mxu0
        %v1261 = vadd.f32 %v480, %v1260
        %v1262 = vpop.f32.mrb[0].mxu0
        %v1263 = vadd.f32 %v481, %v1262
        %v1264 = vpop.f32.mrb[0].mxu0
        %v1265 = vadd.f32 %v482, %v1264
        %v1266 = vpop.f32.mrb[0].mxu0
        %v1267 = vadd.f32 %v483, %v1266
        %1268 = vmatprep.mubr.bf16.mxu0 0
        %1269 = vmatmul.mubr.bf16.gmra.mrb[0].mxu0 %v1159
        %v1270 = vpop.f32.mrb[0].mxu0
        %v1271 = vadd.f32 %v484, %v1270
        %v1272 = vpop.f32.mrb[0].mxu0
        %v1273 = vadd.f32 %v485, %v1272
        %v1274 = vpop.f32.mrb[0].mxu0
        %v1275 = vadd.f32 %v486, %v1274
        %v1276 = vpop.f32.mrb[0].mxu0
        %v1277 = vadd.f32 %v487, %v1276
        %1278 = vmatprep.mubr.bf16.mxu0 0
        %1279 = vmatmul.mubr.bf16.gmra.mrb[0].mxu0 %v1162
        %v1280 = vpop.f32.mrb[0].mxu0
        %v1281 = vadd.f32 %v488, %v1280
        %v1282 = vpop.f32.mrb[0].mxu0
        %v1283 = vadd.f32 %v489, %v1282
        %v1284 = vpop.f32.mrb[0].mxu0
        %v1285 = vadd.f32 %v490, %v1284
        %v1286 = vpop.f32.mrb[0].mxu0
        %v1287 = vadd.f32 %v491, %v1286
        %1288 = vmatprep.mubr.bf16.mxu0 0
        %1289 = vmatmul.mubr.bf16.gmra.mrb[0].mxu0 %v1165
        %v1290 = vpop.f32.mrb[0].mxu0
        %v1291 = vadd.f32 %v492, %v1290
        %v1292 = vpop.f32.mrb[0].mxu0
        %v1293 = vadd.f32 %v493, %v1292
        %v1294 = vpop.f32.mrb[0].mxu0
        %v1295 = vadd.f32 %v494, %v1294
        %v1296 = vpop.f32.mrb[0].mxu0
        %v1297 = vadd.f32 %v495, %v1296
        %1298 = vmatprep.mubr.bf16.mxu0 0
        %1299 = vmatmul.mubr.bf16.gmra.mrb[0].mxu0 %v1168
        %v1300 = vpop.f32.mrb[0].mxu0
        %v1301 = vadd.f32 %v496, %v1300
        %v1302 = vpop.f32.mrb[0].mxu0
        %v1303 = vadd.f32 %v497, %v1302
        %v1304 = vpop.f32.mrb[0].mxu0
        %v1305 = vadd.f32 %v498, %v1304
        %v1306 = vpop.f32.mrb[0].mxu0
        %v1307 = vadd.f32 %v499, %v1306
        %1308 = vmatprep.mubr.bf16.mxu0 0
        %1309 = vmatmul.mubr.bf16.gmra.mrb[0].mxu0 %v1171
        %v1310 = vpop.f32.mrb[0].mxu0
        %v1311 = vadd.f32 %v500, %v1310
        %v1312 = vpop.f32.mrb[0].mxu0
        %v1313 = vadd.f32 %v501, %v1312
        %v1314 = vpop.f32.mrb[0].mxu0
        %v1315 = vadd.f32 %v502, %v1314
        %v1316 = vpop.f32.mrb[0].mxu0
        %v1317 = vadd.f32 %v503, %v1316
        %1318 = vmatprep.mubr.bf16.mxu0 0
        %1319 = vmatmul.mubr.bf16.gmra.mrb[0].mxu0 %v1174
        %v1320 = vpop.f32.mrb[0].mxu0
        %v1321 = vadd.f32 %v504, %v1320
        %v1322 = vpop.f32.mrb[0].mxu0
        %v1323 = vadd.f32 %v505, %v1322
        %v1324 = vpop.f32.mrb[0].mxu0
        %v1325 = vadd.f32 %v506, %v1324
        %v1326 = vpop.f32.mrb[0].mxu0
        %v1327 = vadd.f32 %v507, %v1326
        %1328 = vdwg.mxu0
        %v1329 = vsel %vm685, %v1213, -inf
        %v1330 = vmax.f32 %v1211, %v1329
        %1331 = vmax.xlane.f32.xlu0 %v1330
        %v1332 = vpop.xlane.xlu0 %1331
        %v1333 = vsel %vm685, %v1217, -inf
        %v1334 = vmax.f32 %v1215, %v1333
        %1335 = vmax.xlane.f32.xlu0 %v1334
        %v1336 = vpop.xlane.xlu0 %1335
        %v1337 = vsel %vm685, %v1223, -inf
        %v1338 = vmax.f32 %v1221, %v1337
        %1339 = vmax.xlane.f32.xlu0 %v1338
        %v1340 = vpop.xlane.xlu0 %1339
        %v1341 = vsel %vm685, %v1227, -inf
        %v1342 = vmax.f32 %v1225, %v1341
        %1343 = vmax.xlane.f32.xlu0 %v1342
        %v1344 = vpop.xlane.xlu0 %1343
        %v1345 = vsel %vm685, %v1233, -inf
        %v1346 = vmax.f32 %v1231, %v1345
        %1347 = vmax.xlane.f32.xlu0 %v1346
        %v1348 = vpop.xlane.xlu0 %1347
        %v1349 = vsel %vm685, %v1237, -inf
        %v1350 = vmax.f32 %v1235, %v1349
        %1351 = vmax.xlane.f32.xlu0 %v1350
        %v1352 = vpop.xlane.xlu0 %1351
        %v1353 = vsel %vm685, %v1243, -inf
        %v1354 = vmax.f32 %v1241, %v1353
        %1355 = vmax.xlane.f32.xlu0 %v1354
        %v1356 = vpop.xlane.xlu0 %1355
        %v1357 = vsel %vm685, %v1247, -inf
        %v1358 = vmax.f32 %v1245, %v1357
        %1359 = vmax.xlane.f32.xlu0 %v1358
        %v1360 = vpop.xlane.xlu0 %1359
        %v1361 = vsel %vm685, %v1253, -inf
        %v1362 = vmax.f32 %v1251, %v1361
        %1363 = vmax.xlane.f32.xlu0 %v1362
        %v1364 = vpop.xlane.xlu0 %1363
        %v1365 = vsel %vm685, %v1257, -inf
        %v1366 = vmax.f32 %v1255, %v1365
        %1367 = vmax.xlane.f32.xlu0 %v1366
        %v1368 = vpop.xlane.xlu0 %1367
        %v1369 = vsel %vm685, %v1263, -inf
        %v1370 = vmax.f32 %v1261, %v1369
        %1371 = vmax.xlane.f32.xlu0 %v1370
        %v1372 = vpop.xlane.xlu0 %1371
        %v1373 = vsel %vm685, %v1267, -inf
        %v1374 = vmax.f32 %v1265, %v1373
        %1375 = vmax.xlane.f32.xlu0 %v1374
        %v1376 = vpop.xlane.xlu0 %1375
        %v1377 = vsel %vm685, %v1273, -inf
        %v1378 = vmax.f32 %v1271, %v1377
        %1379 = vmax.xlane.f32.xlu0 %v1378
        %v1380 = vpop.xlane.xlu0 %1379
        %v1381 = vsel %vm685, %v1277, -inf
        %v1382 = vmax.f32 %v1275, %v1381
        %1383 = vmax.xlane.f32.xlu0 %v1382
        %v1384 = vpop.xlane.xlu0 %1383
        %v1385 = vsel %vm685, %v1283, -inf
        %v1386 = vmax.f32 %v1281, %v1385
        %1387 = vmax.xlane.f32.xlu0 %v1386
        %v1388 = vpop.xlane.xlu0 %1387
        %v1389 = vsel %vm685, %v1287, -inf
        %v1390 = vmax.f32 %v1285, %v1389
        %1391 = vmax.xlane.f32.xlu0 %v1390
        %v1392 = vpop.xlane.xlu0 %1391
        %v1393 = vsel %vm685, %v1293, -inf
        %v1394 = vmax.f32 %v1291, %v1393
        %1395 = vmax.xlane.f32.xlu0 %v1394
        %v1396 = vpop.xlane.xlu0 %1395
        %v1397 = vsel %vm685, %v1297, -inf
        %v1398 = vmax.f32 %v1295, %v1397
        %1399 = vmax.xlane.f32.xlu0 %v1398
        %v1400 = vpop.xlane.xlu0 %1399
        %v1401 = vsel %vm685, %v1303, -inf
        %v1402 = vmax.f32 %v1301, %v1401
        %1403 = vmax.xlane.f32.xlu0 %v1402
        %v1404 = vpop.xlane.xlu0 %1403
        %v1405 = vsel %vm685, %v1307, -inf
        %v1406 = vmax.f32 %v1305, %v1405
        %1407 = vmax.xlane.f32.xlu0 %v1406
        %v1408 = vpop.xlane.xlu0 %1407
        %v1409 = vsel %vm685, %v1313, -inf
        %v1410 = vmax.f32 %v1311, %v1409
        %1411 = vmax.xlane.f32.xlu0 %v1410
        %v1412 = vpop.xlane.xlu0 %1411
        %v1413 = vsel %vm685, %v1317, -inf
        %v1414 = vmax.f32 %v1315, %v1413
        %1415 = vmax.xlane.f32.xlu0 %v1414
        %v1416 = vpop.xlane.xlu0 %1415
        %v1417 = vsel %vm685, %v1323, -inf
        %v1418 = vmax.f32 %v1321, %v1417
        %1419 = vmax.xlane.f32.xlu0 %v1418
        %v1420 = vpop.xlane.xlu0 %1419
        %v1421 = vsel %vm685, %v1327, -inf
        %v1422 = vmax.f32 %v1325, %v1421
        %1423 = vmax.xlane.f32.xlu0 %v1422
        %v1424 = vpop.xlane.xlu0 %1423
        %v1425 = vsub.f32 %v1211, %v1332
        %v1426 = vsub.f32 %v1213, %v1332
        %v1427 = vsub.f32 %v1215, %v1336
        %v1428 = vsub.f32 %v1217, %v1336
        %v1429 = vsub.f32 %v1221, %v1340
        %v1430 = vsub.f32 %v1223, %v1340
        %v1431 = vsub.f32 %v1225, %v1344
        %v1432 = vsub.f32 %v1227, %v1344
        %v1433 = vsub.f32 %v1231, %v1348
        %v1434 = vsub.f32 %v1233, %v1348
        %v1435 = vsub.f32 %v1235, %v1352
        %v1436 = vsub.f32 %v1237, %v1352
        %v1437 = vsub.f32 %v1241, %v1356
        %v1438 = vsub.f32 %v1243, %v1356
        %v1439 = vsub.f32 %v1245, %v1360
        %v1440 = vsub.f32 %v1247, %v1360
        %v1441 = vsub.f32 %v1251, %v1364
        %v1442 = vsub.f32 %v1253, %v1364
        %v1443 = vsub.f32 %v1255, %v1368
        %v1444 = vsub.f32 %v1257, %v1368
        %v1445 = vsub.f32 %v1261, %v1372
        %v1446 = vsub.f32 %v1263, %v1372
        %v1447 = vsub.f32 %v1265, %v1376
        %v1448 = vsub.f32 %v1267, %v1376
        %v1449 = vsub.f32 %v1271, %v1380
        %v1450 = vsub.f32 %v1273, %v1380
        %v1451 = vsub.f32 %v1275, %v1384
        %v1452 = vsub.f32 %v1277, %v1384
        %v1453 = vsub.f32 %v1281, %v1388
        %v1454 = vsub.f32 %v1283, %v1388
        %v1455 = vsub.f32 %v1285, %v1392
        %v1456 = vsub.f32 %v1287, %v1392
        %v1457 = vsub.f32 %v1291, %v1396
        %v1458 = vsub.f32 %v1293, %v1396
        %v1459 = vsub.f32 %v1295, %v1400
        %v1460 = vsub.f32 %v1297, %v1400
        %v1461 = vsub.f32 %v1301, %v1404
        %v1462 = vsub.f32 %v1303, %v1404
        %v1463 = vsub.f32 %v1305, %v1408
        %v1464 = vsub.f32 %v1307, %v1408
        %v1465 = vsub.f32 %v1311, %v1412
        %v1466 = vsub.f32 %v1313, %v1412
        %v1467 = vsub.f32 %v1315, %v1416
        %v1468 = vsub.f32 %v1317, %v1416
        %v1469 = vsub.f32 %v1321, %v1420
        %v1470 = vsub.f32 %v1323, %v1420
        %v1471 = vsub.f32 %v1325, %v1424
        %v1472 = vsub.f32 %v1327, %v1424
        %v1473 = vmul.f32 %v1425, 1.442695
        %v1474 = vpow.pop %v1473
        %v1475 = vmul.f32 %v1426, 1.442695
        %v1476 = vpow.pop %v1475
        %v1477 = vmul.f32 %v1427, 1.442695
        %v1478 = vpow.pop %v1477
        %v1479 = vmul.f32 %v1428, 1.442695
        %v1480 = vpow.pop %v1479
        %v1481 = vmul.f32 %v1429, 1.442695
        %v1482 = vpow.pop %v1481
        %v1483 = vmul.f32 %v1430, 1.442695
        %v1484 = vpow.pop %v1483
        %v1485 = vmul.f32 %v1431, 1.442695
        %v1486 = vpow.pop %v1485
        %v1487 = vmul.f32 %v1432, 1.442695
        %v1488 = vpow.pop %v1487
        %v1489 = vmul.f32 %v1433, 1.442695
        %v1490 = vpow.pop %v1489
        %v1491 = vmul.f32 %v1434, 1.442695
        %v1492 = vpow.pop %v1491
        %v1493 = vmul.f32 %v1435, 1.442695
        %v1494 = vpow.pop %v1493
        %v1495 = vmul.f32 %v1436, 1.442695
        %v1496 = vpow.pop %v1495
        %v1497 = vmul.f32 %v1437, 1.442695
        %v1498 = vpow.pop %v1497
        %v1499 = vmul.f32 %v1438, 1.442695
        %v1500 = vpow.pop %v1499
        %v1501 = vmul.f32 %v1439, 1.442695
        %v1502 = vpow.pop %v1501
        %v1503 = vmul.f32 %v1440, 1.442695
        %v1504 = vpow.pop %v1503
        %v1505 = vmul.f32 %v1441, 1.442695
        %v1506 = vpow.pop %v1505
        %v1507 = vmul.f32 %v1442, 1.442695
        %v1508 = vpow.pop %v1507
        %v1509 = vmul.f32 %v1443, 1.442695
        %v1510 = vpow.pop %v1509
        %v1511 = vmul.f32 %v1444, 1.442695
        %v1512 = vpow.pop %v1511
        %v1513 = vmul.f32 %v1445, 1.442695
        %v1514 = vpow.pop %v1513
        %v1515 = vmul.f32 %v1446, 1.442695
        %v1516 = vpow.pop %v1515
        %v1517 = vmul.f32 %v1447, 1.442695
        %v1518 = vpow.pop %v1517
        %v1519 = vmul.f32 %v1448, 1.442695
        %v1520 = vpow.pop %v1519
        %v1521 = vmul.f32 %v1449, 1.442695
        %v1522 = vpow.pop %v1521
        %v1523 = vmul.f32 %v1450, 1.442695
        %v1524 = vpow.pop %v1523
        %v1525 = vmul.f32 %v1451, 1.442695
        %v1526 = vpow.pop %v1525
        %v1527 = vmul.f32 %v1452, 1.442695
        %v1528 = vpow.pop %v1527
        %v1529 = vmul.f32 %v1453, 1.442695
        %v1530 = vpow.pop %v1529
        %v1531 = vmul.f32 %v1454, 1.442695
        %v1532 = vpow.pop %v1531
        %v1533 = vmul.f32 %v1455, 1.442695
        %v1534 = vpow.pop %v1533
        %v1535 = vmul.f32 %v1456, 1.442695
        %v1536 = vpow.pop %v1535
        %v1537 = vmul.f32 %v1457, 1.442695
        %v1538 = vpow.pop %v1537
        %v1539 = vmul.f32 %v1458, 1.442695
        %v1540 = vpow.pop %v1539
        %v1541 = vmul.f32 %v1459, 1.442695
        %v1542 = vpow.pop %v1541
        %v1543 = vmul.f32 %v1460, 1.442695
        %v1544 = vpow.pop %v1543
        %v1545 = vmul.f32 %v1461, 1.442695
        %v1546 = vpow.pop %v1545
        %v1547 = vmul.f32 %v1462, 1.442695
        %v1548 = vpow.pop %v1547
        %v1549 = vmul.f32 %v1463, 1.442695
        %v1550 = vpow.pop %v1549
        %v1551 = vmul.f32 %v1464, 1.442695
        %v1552 = vpow.pop %v1551
        %v1553 = vmul.f32 %v1465, 1.442695
        %v1554 = vpow.pop %v1553
        %v1555 = vmul.f32 %v1466, 1.442695
        %v1556 = vpow.pop %v1555
        %v1557 = vmul.f32 %v1467, 1.442695
        %v1558 = vpow.pop %v1557
        %v1559 = vmul.f32 %v1468, 1.442695
        %v1560 = vpow.pop %v1559
        %v1561 = vmul.f32 %v1469, 1.442695
        %v1562 = vpow.pop %v1561
        %v1563 = vmul.f32 %v1470, 1.442695
        %v1564 = vpow.pop %v1563
        %v1565 = vmul.f32 %v1471, 1.442695
        %v1566 = vpow.pop %v1565
        %v1567 = vmul.f32 %v1472, 1.442695
        %v1568 = vpow.pop %v1567
        %v1569 = vsel %vm685, %v1476, 0.0
        %v1570 = vadd.f32 %v1474, %v1569
        %1571 = vadd.xlane.f32.xlu0 %v1570
        %v1572 = vpop.xlane.xlu0 %1571
        %v1573 = vsel %vm685, %v1480, 0.0
        %v1574 = vadd.f32 %v1478, %v1573
        %1575 = vadd.xlane.f32.xlu0 %v1574
        %v1576 = vpop.xlane.xlu0 %1575
        %v1577 = vsel %vm685, %v1484, 0.0
        %v1578 = vadd.f32 %v1482, %v1577
        %1579 = vadd.xlane.f32.xlu0 %v1578
        %v1580 = vpop.xlane.xlu0 %1579
        %v1581 = vsel %vm685, %v1488, 0.0
        %v1582 = vadd.f32 %v1486, %v1581
        %1583 = vadd.xlane.f32.xlu0 %v1582
        %v1584 = vpop.xlane.xlu0 %1583
        %v1585 = vsel %vm685, %v1492, 0.0
        %v1586 = vadd.f32 %v1490, %v1585
        %1587 = vadd.xlane.f32.xlu0 %v1586
        %v1588 = vpop.xlane.xlu0 %1587
        %v1589 = vsel %vm685, %v1496, 0.0
        %v1590 = vadd.f32 %v1494, %v1589
        %1591 = vadd.xlane.f32.xlu0 %v1590
        %v1592 = vpop.xlane.xlu0 %1591
        %v1593 = vsel %vm685, %v1500, 0.0
        %v1594 = vadd.f32 %v1498, %v1593
        %1595 = vadd.xlane.f32.xlu0 %v1594
        %v1596 = vpop.xlane.xlu0 %1595
        %v1597 = vsel %vm685, %v1504, 0.0
        %v1598 = vadd.f32 %v1502, %v1597
        %1599 = vadd.xlane.f32.xlu0 %v1598
        %v1600 = vpop.xlane.xlu0 %1599
        %v1601 = vsel %vm685, %v1508, 0.0
        %v1602 = vadd.f32 %v1506, %v1601
        %1603 = vadd.xlane.f32.xlu0 %v1602
        %v1604 = vpop.xlane.xlu0 %1603
        %v1605 = vsel %vm685, %v1512, 0.0
        %v1606 = vadd.f32 %v1510, %v1605
        %1607 = vadd.xlane.f32.xlu0 %v1606
        %v1608 = vpop.xlane.xlu0 %1607
        %v1609 = vsel %vm685, %v1516, 0.0
        %v1610 = vadd.f32 %v1514, %v1609
        %1611 = vadd.xlane.f32.xlu0 %v1610
        %v1612 = vpop.xlane.xlu0 %1611
        %v1613 = vsel %vm685, %v1520, 0.0
        %v1614 = vadd.f32 %v1518, %v1613
        %1615 = vadd.xlane.f32.xlu0 %v1614
        %v1616 = vpop.xlane.xlu0 %1615
        %v1617 = vsel %vm685, %v1524, 0.0
        %v1618 = vadd.f32 %v1522, %v1617
        %1619 = vadd.xlane.f32.xlu0 %v1618
        %v1620 = vpop.xlane.xlu0 %1619
        %v1621 = vsel %vm685, %v1528, 0.0
        %v1622 = vadd.f32 %v1526, %v1621
        %1623 = vadd.xlane.f32.xlu0 %v1622
        %v1624 = vpop.xlane.xlu0 %1623
        %v1625 = vsel %vm685, %v1532, 0.0
        %v1626 = vadd.f32 %v1530, %v1625
        %1627 = vadd.xlane.f32.xlu0 %v1626
        %v1628 = vpop.xlane.xlu0 %1627
        %v1629 = vsel %vm685, %v1536, 0.0
        %v1630 = vadd.f32 %v1534, %v1629
        %1631 = vadd.xlane.f32.xlu0 %v1630
        %v1632 = vpop.xlane.xlu0 %1631
        %v1633 = vsel %vm685, %v1540, 0.0
        %v1634 = vadd.f32 %v1538, %v1633
        %1635 = vadd.xlane.f32.xlu0 %v1634
        %v1636 = vpop.xlane.xlu0 %1635
        %v1637 = vsel %vm685, %v1544, 0.0
        %v1638 = vadd.f32 %v1542, %v1637
        %1639 = vadd.xlane.f32.xlu0 %v1638
        %v1640 = vpop.xlane.xlu0 %1639
        %v1641 = vsel %vm685, %v1548, 0.0
        %v1642 = vadd.f32 %v1546, %v1641
        %1643 = vadd.xlane.f32.xlu0 %v1642
        %v1644 = vpop.xlane.xlu0 %1643
        %v1645 = vsel %vm685, %v1552, 0.0
        %v1646 = vadd.f32 %v1550, %v1645
        %1647 = vadd.xlane.f32.xlu0 %v1646
        %v1648 = vpop.xlane.xlu0 %1647
        %v1649 = vsel %vm685, %v1556, 0.0
        %v1650 = vadd.f32 %v1554, %v1649
        %1651 = vadd.xlane.f32.xlu0 %v1650
        %v1652 = vpop.xlane.xlu0 %1651
        %v1653 = vsel %vm685, %v1560, 0.0
        %v1654 = vadd.f32 %v1558, %v1653
        %1655 = vadd.xlane.f32.xlu0 %v1654
        %v1656 = vpop.xlane.xlu0 %1655
        %v1657 = vsel %vm685, %v1564, 0.0
        %v1658 = vadd.f32 %v1562, %v1657
        %1659 = vadd.xlane.f32.xlu0 %v1658
        %v1660 = vpop.xlane.xlu0 %1659
        %v1661 = vsel %vm685, %v1568, 0.0
        %v1662 = vadd.f32 %v1566, %v1661
        %1663 = vadd.xlane.f32.xlu0 %v1662
        %v1664 = vpop.xlane.xlu0 %1663
        %v1665 = vrcp.pop %v1572
        %v1666 = vrcp.pop %v1576
        %v1667 = vrcp.pop %v1580
        %v1668 = vrcp.pop %v1584
        %v1669 = vrcp.pop %v1588
        %v1670 = vrcp.pop %v1592
        %v1671 = vrcp.pop %v1596
        %v1672 = vrcp.pop %v1600
        %v1673 = vrcp.pop %v1604
        %v1674 = vrcp.pop %v1608
        %v1675 = vrcp.pop %v1612
        %v1676 = vrcp.pop %v1616
        %v1677 = vrcp.pop %v1620
        %v1678 = vrcp.pop %v1624
        %v1679 = vrcp.pop %v1628
        %v1680 = vrcp.pop %v1632
        %v1681 = vrcp.pop %v1636
        %v1682 = vrcp.pop %v1640
        %v1683 = vrcp.pop %v1644
        %v1684 = vrcp.pop %v1648
        %v1685 = vrcp.pop %v1652
        %v1686 = vrcp.pop %v1656
        %v1687 = vrcp.pop %v1660
        %v1688 = vrcp.pop %v1664
        %v1689 = vmul.f32 %v1474, %v1665
        %v1690 = vmul.f32 %v1476, %v1665
        %v1691 = vmul.f32 %v1478, %v1666
        %v1692 = vmul.f32 %v1480, %v1666
        %v1693 = vmul.f32 %v1482, %v1667
        %v1694 = vmul.f32 %v1484, %v1667
        %v1695 = vmul.f32 %v1486, %v1668
        %v1696 = vmul.f32 %v1488, %v1668
        %v1697 = vmul.f32 %v1490, %v1669
        %v1698 = vmul.f32 %v1492, %v1669
        %v1699 = vmul.f32 %v1494, %v1670
        %v1700 = vmul.f32 %v1496, %v1670
        %v1701 = vmul.f32 %v1498, %v1671
        %v1702 = vmul.f32 %v1500, %v1671
        %v1703 = vmul.f32 %v1502, %v1672
        %v1704 = vmul.f32 %v1504, %v1672
        %v1705 = vmul.f32 %v1506, %v1673
        %v1706 = vmul.f32 %v1508, %v1673
        %v1707 = vmul.f32 %v1510, %v1674
        %v1708 = vmul.f32 %v1512, %v1674
        %v1709 = vmul.f32 %v1514, %v1675
        %v1710 = vmul.f32 %v1516, %v1675
        %v1711 = vmul.f32 %v1518, %v1676
        %v1712 = vmul.f32 %v1520, %v1676
        %v1713 = vmul.f32 %v1522, %v1677
        %v1714 = vmul.f32 %v1524, %v1677
        %v1715 = vmul.f32 %v1526, %v1678
        %v1716 = vmul.f32 %v1528, %v1678
        %v1717 = vmul.f32 %v1530, %v1679
        %v1718 = vmul.f32 %v1532, %v1679
        %v1719 = vmul.f32 %v1534, %v1680
        %v1720 = vmul.f32 %v1536, %v1680
        %v1721 = vmul.f32 %v1538, %v1681
        %v1722 = vmul.f32 %v1540, %v1681
        %v1723 = vmul.f32 %v1542, %v1682
        %v1724 = vmul.f32 %v1544, %v1682
        %v1725 = vmul.f32 %v1546, %v1683
        %v1726 = vmul.f32 %v1548, %v1683
        %v1727 = vmul.f32 %v1550, %v1684
        %v1728 = vmul.f32 %v1552, %v1684
        %v1729 = vmul.f32 %v1554, %v1685
        %v1730 = vmul.f32 %v1556, %v1685
        %v1731 = vmul.f32 %v1558, %v1686
        %v1732 = vmul.f32 %v1560, %v1686
        %v1733 = vmul.f32 %v1562, %v1687
        %v1734 = vmul.f32 %v1564, %v1687
        %v1735 = vmul.f32 %v1566, %v1688
        %v1736 = vmul.f32 %v1568, %v1688
        %1737 = vxpose.xlu0.b32.start [1/16] %v1211, 128
        %1738 = vxpose.xlu0.b32.cont [2/16] %v1215, 128
        %1739 = vxpose.xlu0.b32.cont [3/16] %v1221, 128
        %1740 = vxpose.xlu0.b32.cont [4/16] %v1225, 128
        %1741 = vxpose.xlu0.b32.cont [5/16] %v1231, 128
        %1742 = vxpose.xlu0.b32.cont [6/16] %v1235, 128
        %1743 = vxpose.xlu0.b32.cont [7/16] %v1241, 128
        %1744 = vxpose.xlu0.b32.cont [8/16] %v1245, 128
        %1745 = vxpose.xlu0.b32.cont [9/16] %v1251, 128
        %1746 = vxpose.xlu0.b32.cont [10/16] %v1255, 128
        %1747 = vxpose.xlu0.b32.cont [11/16] %v1261, 128
        %1748 = vxpose.xlu0.b32.cont [12/16] %v1265, 128
        %1749 = vxpose.xlu0.b32.cont [13/16] %v1271, 128
        %1750 = vxpose.xlu0.b32.cont [14/16] %v1275, 128
        %1751 = vxpose.xlu0.b32.cont [15/16] %v1281, 128
        %1752 = vxpose.xlu0.b32.end [16/16] %v1285, 128
        %v1753 = vpop.trf.xlu0
        %v1754 = vpop.trf.xlu0
        %v1755 = vpop.trf.xlu0
        %v1756 = vpop.trf.xlu0
        %v1757 = vpop.trf.xlu0
        %v1758 = vpop.trf.xlu0
        %v1759 = vpop.trf.xlu0
        %v1760 = vpop.trf.xlu0
        %v1761 = vpop.trf.xlu0
        %v1762 = vpop.trf.xlu0
        %v1763 = vpop.trf.xlu0
        %v1764 = vpop.trf.xlu0
        %v1765 = vpop.trf.xlu0
        %v1766 = vpop.trf.xlu0
        %v1767 = vpop.trf.xlu0
        %v1768 = vpop.trf.xlu0
        %1769 = vxpose.xlu0.b32.start [1/16] %v1213, 128
        %1770 = vxpose.xlu0.b32.cont [2/16] %v1217, 128
        %1771 = vxpose.xlu0.b32.cont [3/16] %v1223, 128
        %1772 = vxpose.xlu0.b32.cont [4/16] %v1227, 128
        %1773 = vxpose.xlu0.b32.cont [5/16] %v1233, 128
        %1774 = vxpose.xlu0.b32.cont [6/16] %v1237, 128
        %1775 = vxpose.xlu0.b32.cont [7/16] %v1243, 128
        %1776 = vxpose.xlu0.b32.cont [8/16] %v1247, 128
        %1777 = vxpose.xlu0.b32.cont [9/16] %v1253, 128
        %1778 = vxpose.xlu0.b32.cont [10/16] %v1257, 128
        %1779 = vxpose.xlu0.b32.cont [11/16] %v1263, 128
        %1780 = vxpose.xlu0.b32.cont [12/16] %v1267, 128
        %1781 = vxpose.xlu0.b32.cont [13/16] %v1273, 128
        %1782 = vxpose.xlu0.b32.cont [14/16] %v1277, 128
        %1783 = vxpose.xlu0.b32.cont [15/16] %v1283, 128
        %1784 = vxpose.xlu0.b32.end [16/16] %v1287, 128
        %v1785 = vpop.trf.xlu0
        %v1786 = vpop.trf.xlu0
        %v1787 = vpop.trf.xlu0
        %v1788 = vpop.trf.xlu0
        %v1789 = vpop.trf.xlu0
        %v1790 = vpop.trf.xlu0
        %v1791 = vpop.trf.xlu0
        %v1792 = vpop.trf.xlu0
        %v1793 = vpop.trf.xlu0
        %v1794 = vpop.trf.xlu0
        %v1795 = vpop.trf.xlu0
        %v1796 = vpop.trf.xlu0
        %v1797 = vpop.trf.xlu0
        %v1798 = vpop.trf.xlu0
        %v1799 = vpop.trf.xlu0
        %v1800 = vpop.trf.xlu0
        %1801 = vxpose.xlu0.b32.start [1/16] %v1291, 128
        %1802 = vxpose.xlu0.b32.cont [2/16] %v1295, 128
        %1803 = vxpose.xlu0.b32.cont [3/16] %v1301, 128
        %1804 = vxpose.xlu0.b32.cont [4/16] %v1305, 128
        %1805 = vxpose.xlu0.b32.cont [5/16] %v1311, 128
        %1806 = vxpose.xlu0.b32.cont [6/16] %v1315, 128
        %1807 = vxpose.xlu0.b32.cont [7/16] %v1321, 128
        %1808 = vxpose.xlu0.b32.cont [8/16] %v1325, 128
        %1809 = vxpose.xlu0.b32.cont [9/16] 0.0, 128
        %1810 = vxpose.xlu0.b32.cont [10/16] 0.0, 128
        %1811 = vxpose.xlu0.b32.cont [11/16] 0.0, 128
        %1812 = vxpose.xlu0.b32.cont [12/16] 0.0, 128
        %1813 = vxpose.xlu0.b32.cont [13/16] 0.0, 128
        %1814 = vxpose.xlu0.b32.cont [14/16] 0.0, 128
        %1815 = vxpose.xlu0.b32.cont [15/16] 0.0, 128
        %1816 = vxpose.xlu0.b32.end [16/16] 0.0, 128
        %v1817 = vpop.trf.xlu0
        %v1818 = vpop.trf.xlu0
        %v1819 = vpop.trf.xlu0
        %v1820 = vpop.trf.xlu0
        %v1821 = vpop.trf.xlu0
        %v1822 = vpop.trf.xlu0
        %v1823 = vpop.trf.xlu0
        %v1824 = vpop.trf.xlu0
        %v1825 = vpop.trf.xlu0
        %v1826 = vpop.trf.xlu0
        %v1827 = vpop.trf.xlu0
        %v1828 = vpop.trf.xlu0
        %v1829 = vpop.trf.xlu0
        %v1830 = vpop.trf.xlu0
        %v1831 = vpop.trf.xlu0
        %v1832 = vpop.trf.xlu0
        %1833 = vxpose.xlu0.b32.start [1/16] %v1293, 128
        %1834 = vxpose.xlu0.b32.cont [2/16] %v1297, 128
        %1835 = vxpose.xlu0.b32.cont [3/16] %v1303, 128
        %1836 = vxpose.xlu0.b32.cont [4/16] %v1307, 128
        %1837 = vxpose.xlu0.b32.cont [5/16] %v1313, 128
        %1838 = vxpose.xlu0.b32.cont [6/16] %v1317, 128
        %1839 = vxpose.xlu0.b32.cont [7/16] %v1323, 128
        %1840 = vxpose.xlu0.b32.cont [8/16] %v1327, 128
        %1841 = vxpose.xlu0.b32.cont [9/16] 0.0, 128
        %1842 = vxpose.xlu0.b32.cont [10/16] 0.0, 128
        %1843 = vxpose.xlu0.b32.cont [11/16] 0.0, 128
        %1844 = vxpose.xlu0.b32.cont [12/16] 0.0, 128
        %1845 = vxpose.xlu0.b32.cont [13/16] 0.0, 128
        %1846 = vxpose.xlu0.b32.cont [14/16] 0.0, 128
        %1847 = vxpose.xlu0.b32.cont [15/16] 0.0, 128
        %1848 = vxpose.xlu0.b32.end [16/16] 0.0, 128
        %v1849 = vpop.trf.xlu0
        %v1850 = vpop.trf.xlu0
        %v1851 = vpop.trf.xlu0
        %v1852 = vpop.trf.xlu0
        %v1853 = vpop.trf.xlu0
        %v1854 = vpop.trf.xlu0
        %v1855 = vpop.trf.xlu0
        %v1856 = vpop.trf.xlu0
        %v1857 = vpop.trf.xlu0
        %v1858 = vpop.trf.xlu0
        %v1859 = vpop.trf.xlu0
        %v1860 = vpop.trf.xlu0
        %v1861 = vpop.trf.xlu0
        %v1862 = vpop.trf.xlu0
        %v1863 = vpop.trf.xlu0
        %v1864 = vpop.trf.xlu0
        %v1865 = vsel %vm685, %v1817, -inf
        %v1866 = vmax.f32 %v1753, %v1865
        %1867 = vmax.xlane.f32.xlu0 %v1866
        %v1868 = vpop.xlane.xlu0 %1867
        %v1869 = vsel %vm685, %v1818, -inf
        %v1870 = vmax.f32 %v1754, %v1869
        %1871 = vmax.xlane.f32.xlu0 %v1870
        %v1872 = vpop.xlane.xlu0 %1871
        %v1873 = vsel %vm685, %v1819, -inf
        %v1874 = vmax.f32 %v1755, %v1873
        %1875 = vmax.xlane.f32.xlu0 %v1874
        %v1876 = vpop.xlane.xlu0 %1875
        %v1877 = vsel %vm685, %v1820, -inf
        %v1878 = vmax.f32 %v1756, %v1877
        %1879 = vmax.xlane.f32.xlu0 %v1878
        %v1880 = vpop.xlane.xlu0 %1879
        %v1881 = vsel %vm685, %v1821, -inf
        %v1882 = vmax.f32 %v1757, %v1881
        %1883 = vmax.xlane.f32.xlu0 %v1882
        %v1884 = vpop.xlane.xlu0 %1883
        %v1885 = vsel %vm685, %v1822, -inf
        %v1886 = vmax.f32 %v1758, %v1885
        %1887 = vmax.xlane.f32.xlu0 %v1886
        %v1888 = vpop.xlane.xlu0 %1887
        %v1889 = vsel %vm685, %v1823, -inf
        %v1890 = vmax.f32 %v1759, %v1889
        %1891 = vmax.xlane.f32.xlu0 %v1890
        %v1892 = vpop.xlane.xlu0 %1891
        %v1893 = vsel %vm685, %v1824, -inf
        %v1894 = vmax.f32 %v1760, %v1893
        %1895 = vmax.xlane.f32.xlu0 %v1894
        %v1896 = vpop.xlane.xlu0 %1895
        %v1897 = vsel %vm685, %v1825, -inf
        %v1898 = vmax.f32 %v1761, %v1897
        %1899 = vmax.xlane.f32.xlu0 %v1898
        %v1900 = vpop.xlane.xlu0 %1899
        %v1901 = vsel %vm685, %v1826, -inf
        %v1902 = vmax.f32 %v1762, %v1901
        %1903 = vmax.xlane.f32.xlu0 %v1902
        %v1904 = vpop.xlane.xlu0 %1903
        %v1905 = vsel %vm685, %v1827, -inf
        %v1906 = vmax.f32 %v1763, %v1905
        %1907 = vmax.xlane.f32.xlu0 %v1906
        %v1908 = vpop.xlane.xlu0 %1907
        %v1909 = vsel %vm685, %v1828, -inf
        %v1910 = vmax.f32 %v1764, %v1909
        %1911 = vmax.xlane.f32.xlu0 %v1910
        %v1912 = vpop.xlane.xlu0 %1911
        %v1913 = vsel %vm685, %v1829, -inf
        %v1914 = vmax.f32 %v1765, %v1913
        %1915 = vmax.xlane.f32.xlu0 %v1914
        %v1916 = vpop.xlane.xlu0 %1915
        %v1917 = vsel %vm685, %v1830, -inf
        %v1918 = vmax.f32 %v1766, %v1917
        %1919 = vmax.xlane.f32.xlu0 %v1918
        %v1920 = vpop.xlane.xlu0 %1919
        %v1921 = vsel %vm685, %v1831, -inf
        %v1922 = vmax.f32 %v1767, %v1921
        %1923 = vmax.xlane.f32.xlu0 %v1922
        %v1924 = vpop.xlane.xlu0 %1923
        %v1925 = vsel %vm685, %v1832, -inf
        %v1926 = vmax.f32 %v1768, %v1925
        %1927 = vmax.xlane.f32.xlu0 %v1926
        %v1928 = vpop.xlane.xlu0 %1927
        %v1929 = vsel %vm685, %v1849, -inf
        %v1930 = vmax.f32 %v1785, %v1929
        %1931 = vmax.xlane.f32.xlu0 %v1930
        %v1932 = vpop.xlane.xlu0 %1931
        %v1933 = vsel %vm685, %v1850, -inf
        %v1934 = vmax.f32 %v1786, %v1933
        %1935 = vmax.xlane.f32.xlu0 %v1934
        %v1936 = vpop.xlane.xlu0 %1935
        %v1937 = vsel %vm685, %v1851, -inf
        %v1938 = vmax.f32 %v1787, %v1937
        %1939 = vmax.xlane.f32.xlu0 %v1938
        %v1940 = vpop.xlane.xlu0 %1939
        %v1941 = vsel %vm685, %v1852, -inf
        %v1942 = vmax.f32 %v1788, %v1941
        %1943 = vmax.xlane.f32.xlu0 %v1942
        %v1944 = vpop.xlane.xlu0 %1943
        %v1945 = vsel %vm685, %v1853, -inf
        %v1946 = vmax.f32 %v1789, %v1945
        %1947 = vmax.xlane.f32.xlu0 %v1946
        %v1948 = vpop.xlane.xlu0 %1947
        %v1949 = vsel %vm685, %v1854, -inf
        %v1950 = vmax.f32 %v1790, %v1949
        %1951 = vmax.xlane.f32.xlu0 %v1950
        %v1952 = vpop.xlane.xlu0 %1951
        %v1953 = vsel %vm685, %v1855, -inf
        %v1954 = vmax.f32 %v1791, %v1953
        %1955 = vmax.xlane.f32.xlu0 %v1954
        %v1956 = vpop.xlane.xlu0 %1955
        %v1957 = vsel %vm685, %v1856, -inf
        %v1958 = vmax.f32 %v1792, %v1957
        %1959 = vmax.xlane.f32.xlu0 %v1958
        %v1960 = vpop.xlane.xlu0 %1959
        %v1961 = vsub.f32 %v1753, %v1868
        %v1962 = vsub.f32 %v1817, %v1868
        %v1963 = vsub.f32 %v1754, %v1872
        %v1964 = vsub.f32 %v1818, %v1872
        %v1965 = vsub.f32 %v1755, %v1876
        %v1966 = vsub.f32 %v1819, %v1876
        %v1967 = vsub.f32 %v1756, %v1880
        %v1968 = vsub.f32 %v1820, %v1880
        %v1969 = vsub.f32 %v1757, %v1884
        %v1970 = vsub.f32 %v1821, %v1884
        %v1971 = vsub.f32 %v1758, %v1888
        %v1972 = vsub.f32 %v1822, %v1888
        %v1973 = vsub.f32 %v1759, %v1892
        %v1974 = vsub.f32 %v1823, %v1892
        %v1975 = vsub.f32 %v1760, %v1896
        %v1976 = vsub.f32 %v1824, %v1896
        %v1977 = vsub.f32 %v1761, %v1900
        %v1978 = vsub.f32 %v1825, %v1900
        %v1979 = vsub.f32 %v1762, %v1904
        %v1980 = vsub.f32 %v1826, %v1904
        %v1981 = vsub.f32 %v1763, %v1908
        %v1982 = vsub.f32 %v1827, %v1908
        %v1983 = vsub.f32 %v1764, %v1912
        %v1984 = vsub.f32 %v1828, %v1912
        %v1985 = vsub.f32 %v1765, %v1916
        %v1986 = vsub.f32 %v1829, %v1916
        %v1987 = vsub.f32 %v1766, %v1920
        %v1988 = vsub.f32 %v1830, %v1920
        %v1989 = vsub.f32 %v1767, %v1924
        %v1990 = vsub.f32 %v1831, %v1924
        %v1991 = vsub.f32 %v1768, %v1928
        %v1992 = vsub.f32 %v1832, %v1928
        %v1993 = vsub.f32 %v1785, %v1932
        %v1994 = vsub.f32 %v1849, %v1932
        %v1995 = vsub.f32 %v1786, %v1936
        %v1996 = vsub.f32 %v1850, %v1936
        %v1997 = vsub.f32 %v1787, %v1940
        %v1998 = vsub.f32 %v1851, %v1940
        %v1999 = vsub.f32 %v1788, %v1944
        %v2000 = vsub.f32 %v1852, %v1944
        %v2001 = vsub.f32 %v1789, %v1948
        %v2002 = vsub.f32 %v1853, %v1948
        %v2003 = vsub.f32 %v1790, %v1952
        %v2004 = vsub.f32 %v1854, %v1952
        %v2005 = vsub.f32 %v1791, %v1956
        %v2006 = vsub.f32 %v1855, %v1956
        %v2007 = vsub.f32 %v1792, %v1960
        %v2008 = vsub.f32 %v1856, %v1960
        %v2009 = vmul.f32 %v1961, 1.442695
        %v2010 = vpow.pop %v2009
        %v2011 = vmul.f32 %v1962, 1.442695
        %v2012 = vpow.pop %v2011
        %v2013 = vmul.f32 %v1963, 1.442695
        %v2014 = vpow.pop %v2013
        %v2015 = vmul.f32 %v1964, 1.442695
        %v2016 = vpow.pop %v2015
        %v2017 = vmul.f32 %v1965, 1.442695
        %v2018 = vpow.pop %v2017
        %v2019 = vmul.f32 %v1966, 1.442695
        %v2020 = vpow.pop %v2019
        %v2021 = vmul.f32 %v1967, 1.442695
        %v2022 = vpow.pop %v2021
        %v2023 = vmul.f32 %v1968, 1.442695
        %v2024 = vpow.pop %v2023
        %v2025 = vmul.f32 %v1969, 1.442695
        %v2026 = vpow.pop %v2025
        %v2027 = vmul.f32 %v1970, 1.442695
        %v2028 = vpow.pop %v2027
        %v2029 = vmul.f32 %v1971, 1.442695
        %v2030 = vpow.pop %v2029
        %v2031 = vmul.f32 %v1972, 1.442695
        %v2032 = vpow.pop %v2031
        %v2033 = vmul.f32 %v1973, 1.442695
        %v2034 = vpow.pop %v2033
        %v2035 = vmul.f32 %v1974, 1.442695
        %v2036 = vpow.pop %v2035
        %v2037 = vmul.f32 %v1975, 1.442695
        %v2038 = vpow.pop %v2037
        %v2039 = vmul.f32 %v1976, 1.442695
        %v2040 = vpow.pop %v2039
        %v2041 = vmul.f32 %v1977, 1.442695
        %v2042 = vpow.pop %v2041
        %v2043 = vmul.f32 %v1978, 1.442695
        %v2044 = vpow.pop %v2043
        %v2045 = vmul.f32 %v1979, 1.442695
        %v2046 = vpow.pop %v2045
        %v2047 = vmul.f32 %v1980, 1.442695
        %v2048 = vpow.pop %v2047
        %v2049 = vmul.f32 %v1981, 1.442695
        %v2050 = vpow.pop %v2049
        %v2051 = vmul.f32 %v1982, 1.442695
        %v2052 = vpow.pop %v2051
        %v2053 = vmul.f32 %v1983, 1.442695
        %v2054 = vpow.pop %v2053
        %v2055 = vmul.f32 %v1984, 1.442695
        %v2056 = vpow.pop %v2055
        %v2057 = vmul.f32 %v1985, 1.442695
        %v2058 = vpow.pop %v2057
        %v2059 = vmul.f32 %v1986, 1.442695
        %v2060 = vpow.pop %v2059
        %v2061 = vmul.f32 %v1987, 1.442695
        %v2062 = vpow.pop %v2061
        %v2063 = vmul.f32 %v1988, 1.442695
        %v2064 = vpow.pop %v2063
        %v2065 = vmul.f32 %v1989, 1.442695
        %v2066 = vpow.pop %v2065
        %v2067 = vmul.f32 %v1990, 1.442695
        %v2068 = vpow.pop %v2067
        %v2069 = vmul.f32 %v1991, 1.442695
        %v2070 = vpow.pop %v2069
        %v2071 = vmul.f32 %v1992, 1.442695
        %v2072 = vpow.pop %v2071
        %v2073 = vmul.f32 %v1993, 1.442695
        %v2074 = vpow.pop %v2073
        %v2075 = vmul.f32 %v1994, 1.442695
        %v2076 = vpow.pop %v2075
        %v2077 = vmul.f32 %v1995, 1.442695
        %v2078 = vpow.pop %v2077
        %v2079 = vmul.f32 %v1996, 1.442695
        %v2080 = vpow.pop %v2079
        %v2081 = vmul.f32 %v1997, 1.442695
        %v2082 = vpow.pop %v2081
        %v2083 = vmul.f32 %v1998, 1.442695
        %v2084 = vpow.pop %v2083
        %v2085 = vmul.f32 %v1999, 1.442695
        %v2086 = vpow.pop %v2085
        %v2087 = vmul.f32 %v2000, 1.442695
        %v2088 = vpow.pop %v2087
        %v2089 = vmul.f32 %v2001, 1.442695
        %v2090 = vpow.pop %v2089
        %v2091 = vmul.f32 %v2002, 1.442695
        %v2092 = vpow.pop %v2091
        %v2093 = vmul.f32 %v2003, 1.442695
        %v2094 = vpow.pop %v2093
        %v2095 = vmul.f32 %v2004, 1.442695
        %v2096 = vpow.pop %v2095
        %v2097 = vmul.f32 %v2005, 1.442695
        %v2098 = vpow.pop %v2097
        %v2099 = vmul.f32 %v2006, 1.442695
        %v2100 = vpow.pop %v2099
        %v2101 = vmul.f32 %v2007, 1.442695
        %v2102 = vpow.pop %v2101
        %v2103 = vmul.f32 %v2008, 1.442695
        %v2104 = vpow.pop %v2103
        %v2105 = vsel %vm685, %v2012, 0.0
        %v2106 = vadd.f32 %v2010, %v2105
        %2107 = vadd.xlane.f32.xlu0 %v2106
        %v2108 = vpop.xlane.xlu0 %2107
        %v2109 = vsel %vm685, %v2016, 0.0
        %v2110 = vadd.f32 %v2014, %v2109
        %2111 = vadd.xlane.f32.xlu0 %v2110
        %v2112 = vpop.xlane.xlu0 %2111
        %v2113 = vsel %vm685, %v2020, 0.0
        %v2114 = vadd.f32 %v2018, %v2113
        %2115 = vadd.xlane.f32.xlu0 %v2114
        %v2116 = vpop.xlane.xlu0 %2115
        %v2117 = vsel %vm685, %v2024, 0.0
        %v2118 = vadd.f32 %v2022, %v2117
        %2119 = vadd.xlane.f32.xlu0 %v2118
        %v2120 = vpop.xlane.xlu0 %2119
        %v2121 = vsel %vm685, %v2028, 0.0
        %v2122 = vadd.f32 %v2026, %v2121
        %2123 = vadd.xlane.f32.xlu0 %v2122
        %v2124 = vpop.xlane.xlu0 %2123
        %v2125 = vsel %vm685, %v2032, 0.0
        %v2126 = vadd.f32 %v2030, %v2125
        %2127 = vadd.xlane.f32.xlu0 %v2126
        %v2128 = vpop.xlane.xlu0 %2127
        %v2129 = vsel %vm685, %v2036, 0.0
        %v2130 = vadd.f32 %v2034, %v2129
        %2131 = vadd.xlane.f32.xlu0 %v2130
        %v2132 = vpop.xlane.xlu0 %2131
        %v2133 = vsel %vm685, %v2040, 0.0
        %v2134 = vadd.f32 %v2038, %v2133
        %2135 = vadd.xlane.f32.xlu0 %v2134
        %v2136 = vpop.xlane.xlu0 %2135
        %v2137 = vsel %vm685, %v2044, 0.0
        %v2138 = vadd.f32 %v2042, %v2137
        %2139 = vadd.xlane.f32.xlu0 %v2138
        %v2140 = vpop.xlane.xlu0 %2139
        %v2141 = vsel %vm685, %v2048, 0.0
        %v2142 = vadd.f32 %v2046, %v2141
        %2143 = vadd.xlane.f32.xlu0 %v2142
        %v2144 = vpop.xlane.xlu0 %2143
        %v2145 = vsel %vm685, %v2052, 0.0
        %v2146 = vadd.f32 %v2050, %v2145
        %2147 = vadd.xlane.f32.xlu0 %v2146
        %v2148 = vpop.xlane.xlu0 %2147
        %v2149 = vsel %vm685, %v2056, 0.0
        %v2150 = vadd.f32 %v2054, %v2149
        %2151 = vadd.xlane.f32.xlu0 %v2150
        %v2152 = vpop.xlane.xlu0 %2151
        %v2153 = vsel %vm685, %v2060, 0.0
        %v2154 = vadd.f32 %v2058, %v2153
        %2155 = vadd.xlane.f32.xlu0 %v2154
        %v2156 = vpop.xlane.xlu0 %2155
        %v2157 = vsel %vm685, %v2064, 0.0
        %v2158 = vadd.f32 %v2062, %v2157
        %2159 = vadd.xlane.f32.xlu0 %v2158
        %v2160 = vpop.xlane.xlu0 %2159
        %v2161 = vsel %vm685, %v2068, 0.0
        %v2162 = vadd.f32 %v2066, %v2161
        %2163 = vadd.xlane.f32.xlu0 %v2162
        %v2164 = vpop.xlane.xlu0 %2163
        %v2165 = vsel %vm685, %v2072, 0.0
        %v2166 = vadd.f32 %v2070, %v2165
        %2167 = vadd.xlane.f32.xlu0 %v2166
        %v2168 = vpop.xlane.xlu0 %2167
        %v2169 = vsel %vm685, %v2076, 0.0
        %v2170 = vadd.f32 %v2074, %v2169
        %2171 = vadd.xlane.f32.xlu0 %v2170
        %v2172 = vpop.xlane.xlu0 %2171
        %v2173 = vsel %vm685, %v2080, 0.0
        %v2174 = vadd.f32 %v2078, %v2173
        %2175 = vadd.xlane.f32.xlu0 %v2174
        %v2176 = vpop.xlane.xlu0 %2175
        %v2177 = vsel %vm685, %v2084, 0.0
        %v2178 = vadd.f32 %v2082, %v2177
        %2179 = vadd.xlane.f32.xlu0 %v2178
        %v2180 = vpop.xlane.xlu0 %2179
        %v2181 = vsel %vm685, %v2088, 0.0
        %v2182 = vadd.f32 %v2086, %v2181
        %2183 = vadd.xlane.f32.xlu0 %v2182
        %v2184 = vpop.xlane.xlu0 %2183
        %v2185 = vsel %vm685, %v2092, 0.0
        %v2186 = vadd.f32 %v2090, %v2185
        %2187 = vadd.xlane.f32.xlu0 %v2186
        %v2188 = vpop.xlane.xlu0 %2187
        %v2189 = vsel %vm685, %v2096, 0.0
        %v2190 = vadd.f32 %v2094, %v2189
        %2191 = vadd.xlane.f32.xlu0 %v2190
        %v2192 = vpop.xlane.xlu0 %2191
        %v2193 = vsel %vm685, %v2100, 0.0
        %v2194 = vadd.f32 %v2098, %v2193
        %2195 = vadd.xlane.f32.xlu0 %v2194
        %v2196 = vpop.xlane.xlu0 %2195
        %v2197 = vsel %vm685, %v2104, 0.0
        %v2198 = vadd.f32 %v2102, %v2197
        %2199 = vadd.xlane.f32.xlu0 %v2198
        %v2200 = vpop.xlane.xlu0 %2199
        %v2201 = vrcp.pop %v2108
        %v2202 = vrcp.pop %v2112
        %v2203 = vrcp.pop %v2116
        %v2204 = vrcp.pop %v2120
        %v2205 = vrcp.pop %v2124
        %v2206 = vrcp.pop %v2128
        %v2207 = vrcp.pop %v2132
        %v2208 = vrcp.pop %v2136
        %v2209 = vrcp.pop %v2140
        %v2210 = vrcp.pop %v2144
        %v2211 = vrcp.pop %v2148
        %v2212 = vrcp.pop %v2152
        %v2213 = vrcp.pop %v2156
        %v2214 = vrcp.pop %v2160
        %v2215 = vrcp.pop %v2164
        %v2216 = vrcp.pop %v2168
        %v2217 = vrcp.pop %v2172
        %v2218 = vrcp.pop %v2176
        %v2219 = vrcp.pop %v2180
        %v2220 = vrcp.pop %v2184
        %v2221 = vrcp.pop %v2188
        %v2222 = vrcp.pop %v2192
        %v2223 = vrcp.pop %v2196
        %v2224 = vrcp.pop %v2200
        %v2225 = vmul.f32 %v2010, %v2201
        %v2226 = vmul.f32 %v2012, %v2201
        %v2227 = vmul.f32 %v2014, %v2202
        %v2228 = vmul.f32 %v2016, %v2202
        %v2229 = vmul.f32 %v2018, %v2203
        %v2230 = vmul.f32 %v2020, %v2203
        %v2231 = vmul.f32 %v2022, %v2204
        %v2232 = vmul.f32 %v2024, %v2204
        %v2233 = vmul.f32 %v2026, %v2205
        %v2234 = vmul.f32 %v2028, %v2205
        %v2235 = vmul.f32 %v2030, %v2206
        %v2236 = vmul.f32 %v2032, %v2206
        %v2237 = vmul.f32 %v2034, %v2207
        %v2238 = vmul.f32 %v2036, %v2207
        %v2239 = vmul.f32 %v2038, %v2208
        %v2240 = vmul.f32 %v2040, %v2208
        %v2241 = vmul.f32 %v2042, %v2209
        %v2242 = vmul.f32 %v2044, %v2209
        %v2243 = vmul.f32 %v2046, %v2210
        %v2244 = vmul.f32 %v2048, %v2210
        %v2245 = vmul.f32 %v2050, %v2211
        %v2246 = vmul.f32 %v2052, %v2211
        %v2247 = vmul.f32 %v2054, %v2212
        %v2248 = vmul.f32 %v2056, %v2212
        %v2249 = vmul.f32 %v2058, %v2213
        %v2250 = vmul.f32 %v2060, %v2213
        %v2251 = vmul.f32 %v2062, %v2214
        %v2252 = vmul.f32 %v2064, %v2214
        %v2253 = vmul.f32 %v2066, %v2215
        %v2254 = vmul.f32 %v2068, %v2215
        %v2255 = vmul.f32 %v2070, %v2216
        %v2256 = vmul.f32 %v2072, %v2216
        %v2257 = vmul.f32 %v2074, %v2217
        %v2258 = vmul.f32 %v2076, %v2217
        %v2259 = vmul.f32 %v2078, %v2218
        %v2260 = vmul.f32 %v2080, %v2218
        %v2261 = vmul.f32 %v2082, %v2219
        %v2262 = vmul.f32 %v2084, %v2219
        %v2263 = vmul.f32 %v2086, %v2220
        %v2264 = vmul.f32 %v2088, %v2220
        %v2265 = vmul.f32 %v2090, %v2221
        %v2266 = vmul.f32 %v2092, %v2221
        %v2267 = vmul.f32 %v2094, %v2222
        %v2268 = vmul.f32 %v2096, %v2222
        %v2269 = vmul.f32 %v2098, %v2223
        %v2270 = vmul.f32 %v2100, %v2223
        %v2271 = vmul.f32 %v2102, %v2224
        %v2272 = vmul.f32 %v2104, %v2224
        %v2273 = vpack.c.bf16 %v1045, %v1043
        %v2274 = vpack.c.bf16 %v1046, %v1044
        %v2275 = vpack.c.bf16 %v2227, %v2225
        %v2276 = vpack.c.bf16 %v2228, %v2226
        %v2277 = vpack.c.bf16 %v2231, %v2229
        %v2278 = vpack.c.bf16 %v2232, %v2230
        %v2279 = vpack.c.bf16 %v2235, %v2233
        %v2280 = vpack.c.bf16 %v2236, %v2234
        %v2281 = vpack.c.bf16 %v2239, %v2237
        %v2282 = vpack.c.bf16 %v2240, %v2238
        %v2283 = vpack.c.bf16 %v2243, %v2241
        %v2284 = vpack.c.bf16 %v2244, %v2242
        %v2285 = vpack.c.bf16 %v2247, %v2245
        %v2286 = vpack.c.bf16 %v2248, %v2246
        %v2287 = vpack.c.bf16 %v2251, %v2249
        %v2288 = vpack.c.bf16 %v2252, %v2250
        %v2289 = vpack.c.bf16 %v2255, %v2253
        %v2290 = vpack.c.bf16 %v2256, %v2254
        %v2291 = vpack.c.bf16 %v2259, %v2257
        %v2292 = vpack.c.bf16 %v2260, %v2258
        %v2293 = vpack.c.bf16 %v2263, %v2261
        %v2294 = vpack.c.bf16 %v2264, %v2262
        %v2295 = vpack.c.bf16 %v2267, %v2265
        %v2296 = vpack.c.bf16 %v2268, %v2266
        %v2297 = vpack.c.bf16 %v2271, %v2269
        %v2298 = vpack.c.bf16 %v2272, %v2270
        %v2300 = vsel %vm685, %v2274, 0
        %v2303 = vsel %vm685, %v2276, 0
        %v2306 = vsel %vm685, %v2278, 0
        %v2309 = vsel %vm685, %v2280, 0
        %v2312 = vsel %vm685, %v2282, 0
        %v2315 = vsel %vm685, %v2284, 0
        %v2318 = vsel %vm685, %v2286, 0
        %v2321 = vsel %vm685, %v2288, 0
        %v2324 = vsel %vm685, %v2290, 0
        %v2327 = vsel %vm685, %v2292, 0
        %v2330 = vsel %vm685, %v2294, 0
        %v2333 = vsel %vm685, %v2296, 0
        %v2336 = vsel %vm685, %v2298, 0
        %2338 = vmatprep.subr.bf16.mxu0 %v2303
        %2339 = vmatpush1.bf16.xpose.msra.mxu0 %v2275
        %2340 = vmatprep.subr.bf16.mxu0 %v2306
        %2341 = vmatpush1.bf16.xpose.msra.mxu0 %v2277
        %2342 = vmatprep.subr.bf16.mxu0 %v2309
        %2343 = vmatpush1.bf16.xpose.msra.mxu0 %v2279
        %2344 = vmatprep.subr.bf16.mxu0 %v2312
        %2345 = vmatpush1.bf16.xpose.msra.mxu0 %v2281
        %2346 = vmatprep.subr.bf16.mxu0 %v2315
        %2347 = vmatpush1.bf16.xpose.msra.mxu0 %v2283
        %2348 = vmatprep.subr.bf16.mxu0 %v2318
        %2349 = vmatpush1.bf16.xpose.msra.mxu0 %v2285
        %2350 = vmatprep.subr.bf16.mxu0 %v2321
        %2351 = vmatpush1.bf16.xpose.msra.mxu0 %v2287
        %2352 = vmatprep.subr.bf16.mxu0 %v2324
        %2353 = vmatpush1.bf16.xpose.msra.mxu0 %v2289
        %2354 = vmatprep.subr.bf16.mxu0 %v2327
        %2355 = vmatpush1.bf16.xpose.msra.mxu0 %v2291
        %2356 = vmatprep.subr.bf16.mxu0 %v2330
        %2357 = vmatpush1.bf16.xpose.msra.mxu0 %v2293
        %2358 = vmatprep.subr.bf16.mxu0 %v2333
        %2359 = vmatpush1.bf16.xpose.msra.mxu0 %v2295
        %2360 = vmatprep.subr.bf16.mxu0 %v2336
        %2361 = vmatpush1.bf16.xpose.msra.mxu0 %v2297
        %2362 = vmatprep.subr.bf16.mxu0 0
        %2363 = vmatpush1.bf16.xpose.msra.mxu0 0
        %2364 = vmatprep.subr.bf16.mxu0 0
        %2365 = vmatpush1.bf16.xpose.msra.mxu0 0
        %2366 = vmatprep.subr.bf16.mxu0 0
        %2367 = vmatpush1.bf16.xpose.msra.mxu0 0
        %2368 = vmatprep.subr.bf16.mxu0 0
        %2369 = vmatpush1.bf16.xpose.msra.mxu0 0
        %2370 = vmatprep.mubr.bf16.mxu0 %v2300
        %2371 = vmatmul.mubr.bf16.gmra.mrb[0].mxu0 %v2273
        %v2372 = vpop.f32.mrb[0].mxu0
        %v2373 = vadd.f32 0.0, %v2372
        %v2374 = vpop.f32.mrb[0].mxu0
        %v2375 = vadd.f32 0.0, %v2374
        %v2376 = vpop.f32.mrb[0].mxu0
        %v2377 = vadd.f32 0.0, %v2376
        %v2378 = vpop.f32.mrb[0].mxu0
        %v2379 = vadd.f32 0.0, %v2378
        %2380 = vdwg.mxu0
        %v2381 = vpack.c.bf16 %v1060, %v1058
        %v2382 = vpack.c.bf16 %v1061, %v1059
        %v2383 = vpack.c.bf16 %v1691, %v1689
        %v2384 = vpack.c.bf16 %v1692, %v1690
        %v2385 = vpack.c.bf16 %v1695, %v1693
        %v2386 = vpack.c.bf16 %v1696, %v1694
        %v2387 = vpack.c.bf16 %v1699, %v1697
        %v2388 = vpack.c.bf16 %v1700, %v1698
        %v2389 = vpack.c.bf16 %v1703, %v1701
        %v2390 = vpack.c.bf16 %v1704, %v1702
        %v2391 = vpack.c.bf16 %v1707, %v1705
        %v2392 = vpack.c.bf16 %v1708, %v1706
        %v2393 = vpack.c.bf16 %v1711, %v1709
        %v2394 = vpack.c.bf16 %v1712, %v1710
        %v2395 = vpack.c.bf16 %v1715, %v1713
        %v2396 = vpack.c.bf16 %v1716, %v1714
        %v2397 = vpack.c.bf16 %v1719, %v1717
        %v2398 = vpack.c.bf16 %v1720, %v1718
        %v2399 = vpack.c.bf16 %v1723, %v1721
        %v2400 = vpack.c.bf16 %v1724, %v1722
        %v2401 = vpack.c.bf16 %v1727, %v1725
        %v2402 = vpack.c.bf16 %v1728, %v1726
        %v2403 = vpack.c.bf16 %v1731, %v1729
        %v2404 = vpack.c.bf16 %v1732, %v1730
        %v2405 = vpack.c.bf16 %v1735, %v1733
        %v2406 = vpack.c.bf16 %v1736, %v1734
        %v2408 = vsel %vm685, %v2382, 0
        %v2411 = vsel %vm685, %v2384, 0
        %v2414 = vsel %vm685, %v2386, 0
        %v2417 = vsel %vm685, %v2388, 0
        %v2420 = vsel %vm685, %v2390, 0
        %v2423 = vsel %vm685, %v2392, 0
        %v2426 = vsel %vm685, %v2394, 0
        %v2429 = vsel %vm685, %v2396, 0
        %v2432 = vsel %vm685, %v2398, 0
        %v2435 = vsel %vm685, %v2400, 0
        %v2438 = vsel %vm685, %v2402, 0
        %v2441 = vsel %vm685, %v2404, 0
        %v2444 = vsel %vm685, %v2406, 0
        %2446 = vmatprep.subr.bf16.mxu0 %v2411
        %2447 = vmatpush1.bf16.xpose.msra.mxu0 %v2383
        %2448 = vmatprep.subr.bf16.mxu0 %v2414
        %2449 = vmatpush1.bf16.xpose.msra.mxu0 %v2385
        %2450 = vmatprep.subr.bf16.mxu0 %v2417
        %2451 = vmatpush1.bf16.xpose.msra.mxu0 %v2387
        %2452 = vmatprep.subr.bf16.mxu0 %v2420
        %2453 = vmatpush1.bf16.xpose.msra.mxu0 %v2389
        %2454 = vmatprep.subr.bf16.mxu0 %v2423
        %2455 = vmatpush1.bf16.xpose.msra.mxu0 %v2391
        %2456 = vmatprep.subr.bf16.mxu0 %v2426
        %2457 = vmatpush1.bf16.xpose.msra.mxu0 %v2393
        %2458 = vmatprep.subr.bf16.mxu0 %v2429
        %2459 = vmatpush1.bf16.xpose.msra.mxu0 %v2395
        %2460 = vmatprep.subr.bf16.mxu0 %v2432
        %2461 = vmatpush1.bf16.xpose.msra.mxu0 %v2397
        %2462 = vmatprep.subr.bf16.mxu0 %v2435
        %2463 = vmatpush1.bf16.xpose.msra.mxu0 %v2399
        %2464 = vmatprep.subr.bf16.mxu0 %v2438
        %2465 = vmatpush1.bf16.xpose.msra.mxu0 %v2401
        %2466 = vmatprep.subr.bf16.mxu0 %v2441
        %2467 = vmatpush1.bf16.xpose.msra.mxu0 %v2403
        %2468 = vmatprep.subr.bf16.mxu0 %v2444
        %2469 = vmatpush1.bf16.xpose.msra.mxu0 %v2405
        %2470 = vmatprep.subr.bf16.mxu0 0
        %2471 = vmatpush1.bf16.xpose.msra.mxu0 0
        %2472 = vmatprep.subr.bf16.mxu0 0
        %2473 = vmatpush1.bf16.xpose.msra.mxu0 0
        %2474 = vmatprep.subr.bf16.mxu0 0
        %2475 = vmatpush1.bf16.xpose.msra.mxu0 0
        %2476 = vmatprep.subr.bf16.mxu0 0
        %2477 = vmatpush1.bf16.xpose.msra.mxu0 0
        %2478 = vmatprep.mubr.bf16.mxu0 %v2408
        %2479 = vmatmul.mubr.bf16.gmra.mrb[0].mxu0 %v2381
        %v2480 = vpop.f32.mrb[0].mxu0
        %v2481 = vadd.f32 0.0, %v2480
        %v2482 = vpop.f32.mrb[0].mxu0
        %v2483 = vadd.f32 0.0, %v2482
        %v2484 = vpop.f32.mrb[0].mxu0
        %v2485 = vadd.f32 0.0, %v2484
        %v2486 = vpop.f32.mrb[0].mxu0
        %v2487 = vadd.f32 0.0, %v2486
        %2488 = vdwg.mxu0
        %2491 = vrot.lane.b32.xlu0 %v2373, 64
        %v2492 = vpop.permute.xlu0 %2491
        %2493 = vrot.lane.b32.xlu0 %v2377, 64
        %v2494 = vpop.permute.xlu0 %2493
        %v2497 = vadd.f32 %v2373, %v2492
        %v2498 = vadd.f32 %v2377, %v2494
        %v2499 = vadd.f32 %v2497, %v2375
        %v2500 = vadd.f32 %v2498, %v2379
        %2503 = vrot.lane.b32.xlu0 %v2481, 64
        %v2504 = vpop.permute.xlu0 %2503
        %2505 = vrot.lane.b32.xlu0 %v2485, 64
        %v2506 = vpop.permute.xlu0 %2505
        %v2509 = vadd.f32 %v2481, %v2504
        %v2510 = vadd.f32 %v2485, %v2506
        %v2511 = vadd.f32 %v2509, %v2483
        %v2512 = vadd.f32 %v2510, %v2487
        %2515 = vrot.lane.b32.xlu0 %v2511, 64
        %v2516 = vpop.permute.xlu0 %2515
        %2517 = vrot.lane.b32.xlu0 %v2512, 64
        %v2518 = vpop.permute.xlu0 %2517
        %v2521 = vsel %vm685, %v2499, %v2516
        %v2522 = vsel %vm685, %v2500, %v2518
        %2523 = vst [vmem:[%s394] sm:$0xff] %v2521
        %2524 = vst [vmem:[%s394 + $0x8] sm:$0xff] %v2522
        %p2525 = scmp.lt.s32.totalorder %s22, 1
        %s2526 = scalar_select %p2525, %s22, 1
        %s2527 = smul.addr %s2526, 2
        %s2528 = smul.addr %s2527, 8
        %s2529 = scalar_lea.vmem %s10, %s2528
        // Predicated region
        $region65: #{multi_attn_forward.1} parent=59 // pred_check
          %p2530 = pneg %p260
        $region66: #{multi_attn_forward.1} parent=59 // pred_check_branch
          %2532 = sbr.rel (%p2530) target = $region68
        $region67: #{multi_attn_forward.1} parent=59 // pred_region
          _
        $region68: #{multi_attn_forward.1} parent=59 // pred_fallthru
          _
      $region60: #{multi_attn_forward.1} parent=5 // pred_fallthru
        _
      %p2533 = scmp.le.s32.totalorder 2, %s17
      // Predicated region
      $region69: #{multi_attn_forward.1} parent=5 // pred_check
        %p2534 = pneg %p2533
      $region70: #{multi_attn_forward.1} parent=5 // pred_check_branch
        %2536 = sbr.rel (%p2534) target = $region72
      $region71: #{multi_attn_forward.1} parent=5 // pred_region
        %s2537 = ssub.s32 %s17, 2
        // Predicated region
        $region73: #{multi_attn_forward.1} parent=71 // pred_check
          %p2538 = pneg %p266
        $region74: #{multi_attn_forward.1} parent=71 // pred_check_branch
          %2540 = sbr.rel (%p2538) target = $region76
        $region75: #{multi_attn_forward.1} parent=71 // pred_region
          %p2541 = scmp.lt.s32.totalorder %s23, 1
          %s2542 = scalar_select %p2541, %s23, 1
          %s2543 = smul.addr %s2542, 2
          %s2544 = smul.addr %s2543, 8
          %s2545 = scalar_lea.vmem %s10, %s2544
        $region76: #{multi_attn_forward.1} parent=71 // pred_fallthru
          _
      $region72: #{multi_attn_forward.1} parent=5 // pred_fallthru
        _
    $region6: #{multi_attn_forward.1} parent=1 // loop_footer
      %s21 = sadd.s32 1, %s17
    $region7: #{multi_attn_forward.1} parent=1 // loop_footer_branch
      %16 = sbr.rel target = $region3
    $region8: #{multi_attn_forward.1} parent=1 // loop_exit
      _
    %2546 = vsyncpa [#allocation3], 1
    %s2547 = scalar_lea.sflag [#allocation3], 1
    %2548 = vsyncpa %s2547, 1

</llo_original>
